<compile_context>
chip_gen: v7x
topology: tpu7x:2x2x1
jax: 0.10.0
libtpu: 0.0.40
codegen_flags: <defaults>
</compile_context>

<pallas_src>
import jax
import jax.numpy as jnp
from jax.experimental import pallas as pl
from jax.experimental.pallas import tpu as pltpu

EPS = 1e-5  # PyTorch BatchNorm1d default eps

INPUT_DIM = 1404
HIDDEN = (512, 256, 128)
NUM_CLASSES = 6

LANE = 128
SUBLANE = 8
TILE_B_MAX = 512  # per-step batch tile (amortizes per-step overhead, fits VMEM on all gens)


def _round_up(x, m):
    return (x + m - 1) // m * m


OUT_PAD = _round_up(NUM_CLASSES, LANE)  # 128 -> unmasked lane-dense stores


# ----------------------------------------------------------------------------
# Kernel: 3x (Linear[+folded BN] + ReLU) + final Linear, one batch tile per step.
# x and the weights are bf16 (MXU operands); accumulation / bias / ReLU are f32.
# ----------------------------------------------------------------------------
def mlp_kernel(x_ref,
               w1_ref, b1_ref,
               w2_ref, b2_ref,
               w3_ref, b3_ref,
               w4_ref, b4_ref,
               out_ref):
    def lin(h, w_ref, b_ref):
        # bf16 x bf16 -> f32 accumulation on the MXU; bias add in f32.
        return jnp.dot(h.astype(jnp.bfloat16), w_ref[...],
                       preferred_element_type=jnp.float32) + b_ref[...]

    h = x_ref[...]                                   # (tile_b, 1404) bf16, straight to MXU
    h = jnp.maximum(lin(h, w1_ref, b1_ref), 0.0)     # Linear+BN fold, ReLU (Dropout = id)
    h = jnp.maximum(lin(h, w2_ref, b2_ref), 0.0)
    h = jnp.maximum(lin(h, w3_ref, b3_ref), 0.0)
    out_ref[...] = lin(h, w4_ref, b4_ref).astype(out_ref.dtype)


# ----------------------------------------------------------------------------
# Parameter construction (matches the PyTorch module's shapes; weights stored
# (F_in, F_out) = transpose of PyTorch's (out, in)).  BN params made non-trivial
# so the fold is actually exercised.
# ----------------------------------------------------------------------------
def make_params(key):
    dims = (INPUT_DIM,) + HIDDEN + (NUM_CLASSES,)
    params = {}
    keys = jax.random.split(key, 6 * (len(dims) - 1))
    for li in range(len(dims) - 1):
        fan_in, fan_out = dims[li], dims[li + 1]
        kw, kb, kg, kbe, km, kv = keys[6 * li: 6 * li + 6]
        bound = 1.0 / jnp.sqrt(fan_in)
        params[f"w{li + 1}"] = jax.random.uniform(
            kw, (fan_in, fan_out), jnp.float32, -bound, bound)
        params[f"b{li + 1}"] = jax.random.uniform(
            kb, (1, fan_out), jnp.float32, -bound, bound)
        if li < len(HIDDEN):  # BatchNorm1d only on hidden layers
            params[f"g{li + 1}"] = jax.random.uniform(kg, (1, fan_out), jnp.float32, 0.5, 1.5)
            params[f"be{li + 1}"] = 0.1 * jax.random.normal(kbe, (1, fan_out), jnp.float32)
            params[f"m{li + 1}"] = 0.1 * jax.random.normal(km, (1, fan_out), jnp.float32)
            params[f"v{li + 1}"] = jax.random.uniform(kv, (1, fan_out), jnp.float32, 0.5, 1.5)
    return params


def prepare_params(p):
    """Fold eval-mode BN into the Linears, pad the 6-wide output to 128 lanes,
    cast weights to bf16 (biases stay f32)."""
    prep = {}
    for li in range(1, 4):
        scale = p[f"g{li}"] * jax.lax.rsqrt(p[f"v{li}"] + EPS)        # (1, F_out)
        prep[f"w{li}"] = (p[f"w{li}"] * scale).astype(jnp.bfloat16)   # broadcast over rows
        prep[f"b{li}"] = ((p[f"b{li}"] - p[f"m{li}"]) * scale + p[f"be{li}"]).astype(jnp.float32)
    w4 = jnp.zeros((HIDDEN[-1], OUT_PAD), jnp.float32).at[:, :NUM_CLASSES].set(p["w4"])
    b4 = jnp.zeros((1, OUT_PAD), jnp.float32).at[:, :NUM_CLASSES].set(p["b4"])
    prep["w4"] = w4.astype(jnp.bfloat16)
    prep["b4"] = b4
    return prep


# ----------------------------------------------------------------------------
# Wrapper: batch-tiled 1-D grid, weights resident in VMEM across all steps.
# Preferred input dtype is bf16 (avoids DMAing an f32 copy of the activations).
# ----------------------------------------------------------------------------
@jax.jit
def simple_classifier(x, prep):
    B = x.shape[0]
    x = x.astype(jnp.bfloat16)  # no-op if the caller already passes bf16 (preferred)

    # >= 2 grid steps whenever possible (keeps both v7x TensorCores busy); minimum
    # tile is one sublane group (8 rows) unless B itself is smaller.
    if B <= SUBLANE:
        tile_b = B
    else:
        tile_b = min(TILE_B_MAX, _round_up(pl.cdiv(B, 2), SUBLANE))
    grid = (pl.cdiv(B, tile_b),)

    resident = lambda i: (0, 0)   # same block every grid step -> stays in VMEM
    batch_map = lambda i: (i, 0)

    args = (x,
            prep["w1"], prep["b1"],
            prep["w2"], prep["b2"],
            prep["w3"], prep["b3"],
            prep["w4"], prep["b4"])

    in_specs = [pl.BlockSpec((tile_b, INPUT_DIM), batch_map)]  # full 1404 last dim: exempt
    for a in args[1:]:
        in_specs.append(pl.BlockSpec(a.shape, resident))

    out = pl.pallas_call(
        mlp_kernel,
        out_shape=jax.ShapeDtypeStruct((B, OUT_PAD), jnp.bfloat16),
        grid=grid,
        in_specs=in_specs,
        out_specs=pl.BlockSpec((tile_b, OUT_PAD), batch_map),
        compiler_params=pltpu.CompilerParams(
            dimension_semantics=("parallel",),
            vmem_limit_bytes=48 * 1024 * 1024),
    )(*args)

    return out[:, :NUM_CLASSES].astype(jnp.float32)


# ----------------------------------------------------------------------------
# References.
# ----------------------------------------------------------------------------
def reference_original(x, p):
    """Pure-JAX reference of the original module semantics (f32, explicit BN)."""
    h = x
    for li in range(1, 4):
        h = h @ p[f"w{li}"] + p[f"b{li}"]
        h = p[f"g{li}"] * (h - p[f"m{li}"]) * jax.lax.rsqrt(p[f"v{li}"] + EPS) + p[f"be{li}"]
        h = jnp.maximum(h, 0.0)
    return h @ p["w4"] + p["b4"]


def reference_prepared(x_bf16, prep):
    """Pure-JAX reference doing the kernel's math (folded BN, bf16 operands, f32 acc)."""
    h = x_bf16
    for li in range(1, 5):
        h = jnp.dot(h.astype(jnp.bfloat16), prep[f"w{li}"],
                    preferred_element_type=jnp.float32) + prep[f"b{li}"]
        if li < 4:
            h = jnp.maximum(h, 0.0)
    return h[:, :NUM_CLASSES]


if __name__ == "__main__":
    key = jax.random.PRNGKey(0)
    kx, kp = jax.random.split(key)
    B = 8
    x = jax.random.normal(kx, (B, INPUT_DIM), jnp.float32)
    params = make_params(kp)
    prep = prepare_params(params)

    x_bf16 = x.astype(jnp.bfloat16)          # preferred kernel input dtype
    out = jax.block_until_ready(simple_classifier(x_bf16, prep))

    assert out.shape == (B, NUM_CLASSES), out.shape
    assert out.dtype == jnp.float32, out.dtype

    # Exact-math check (same folded bf16 weights / bf16 input, f32 accumulation);
    # tolerance covers only the final bf16 rounding of the kernel output.
    ref_match = reference_prepared(x_bf16, prep)
    assert jnp.allclose(out, ref_match, atol=1e-2, rtol=1e-2), \
        float(jnp.max(jnp.abs(out - ref_match)))

    # Semantics check vs. the original f32 module (explicit BN, f32 input/weights);
    # tolerance loosened for bf16 input + bf16 weights.
    ref_f32 = reference_original(x, params)
    assert jnp.allclose(out, ref_f32, atol=1e-1, rtol=1e-1), \
        float(jnp.max(jnp.abs(out - ref_f32)))

    print("KERNEL_OK")
</pallas_src>

<mosaic_0001>
module attributes {stable_mosaic.version = 11 : i64} {
  func.func @mlp_kernel(%arg0: i32, %arg1: memref<8x1404xbf16, #tpu.memory_space<vmem>>, %arg2: memref<1404x512xbf16, #tpu.memory_space<vmem>>, %arg3: memref<1x512xf32, #tpu.memory_space<vmem>>, %arg4: memref<512x256xbf16, #tpu.memory_space<vmem>>, %arg5: memref<1x256xf32, #tpu.memory_space<vmem>>, %arg6: memref<256x128xbf16, #tpu.memory_space<vmem>>, %arg7: memref<1x128xf32, #tpu.memory_space<vmem>>, %arg8: memref<128x128xbf16, #tpu.memory_space<vmem>>, %arg9: memref<1x128xf32, #tpu.memory_space<vmem>>, %arg10: memref<8x128xbf16, #tpu.memory_space<vmem>>) attributes {dimension_semantics = [#tpu.dimension_semantics<parallel>], iteration_bounds = array<i64: 1>, scalar_prefetch = 0 : i64, scratch_operands = 0 : i64, tpu.core_type = #tpu.core_type<tc>, window_params = [{transform_indices = @transform_0, window_bounds = array<i64: 8, 1404>}, {pipeline_mode = #tpu.pipeline_mode<synchronous>, transform_indices = @transform_1, window_bounds = array<i64: 1404, 512>}, {pipeline_mode = #tpu.pipeline_mode<synchronous>, transform_indices = @transform_2, window_bounds = array<i64: 1, 512>}, {pipeline_mode = #tpu.pipeline_mode<synchronous>, transform_indices = @transform_3, window_bounds = array<i64: 512, 256>}, {pipeline_mode = #tpu.pipeline_mode<synchronous>, transform_indices = @transform_4, window_bounds = array<i64: 1, 256>}, {pipeline_mode = #tpu.pipeline_mode<synchronous>, transform_indices = @transform_5, window_bounds = array<i64: 256, 128>}, {pipeline_mode = #tpu.pipeline_mode<synchronous>, transform_indices = @transform_6, window_bounds = array<i64: 1, 128>}, {pipeline_mode = #tpu.pipeline_mode<synchronous>, transform_indices = @transform_7, window_bounds = array<i64: 128, 128>}, {pipeline_mode = #tpu.pipeline_mode<synchronous>, transform_indices = @transform_8, window_bounds = array<i64: 1, 128>}, {transform_indices = @transform_9, window_bounds = array<i64: 8, 128>}]} {
    %c0 = arith.constant 0 : index
    %c0_0 = arith.constant 0 : index
    %0 = vector.load %arg1[%c0, %c0_0] : memref<8x1404xbf16, #tpu.memory_space<vmem>>, vector<8x1404xbf16>
    %c0_1 = arith.constant 0 : index
    %c0_2 = arith.constant 0 : index
    %1 = vector.load %arg2[%c0_1, %c0_2] : memref<1404x512xbf16, #tpu.memory_space<vmem>>, vector<1404x512xbf16>
    %cst = arith.constant dense<0.000000e+00> : vector<8x512xf32>
    %2 = tpu.matmul %0, %1, %cst {dimension_numbers = #tpu.dot_dimension_numbers<[1], [0], [0], [1], [0, 0, 1, 1], [], []>} : vector<8x1404xbf16>, vector<1404x512xbf16>, vector<8x512xf32> -> vector<8x512xf32>
    %c0_3 = arith.constant 0 : index
    %c0_4 = arith.constant 0 : index
    %3 = vector.load %arg3[%c0_3, %c0_4] : memref<1x512xf32, #tpu.memory_space<vmem>>, vector<1x512xf32>
    %4 = vector.broadcast %3 : vector<1x512xf32> to vector<8x512xf32>
    %5 = arith.addf %2, %4 : vector<8x512xf32>
    %cst_5 = arith.constant 0.000000e+00 : f32
    %6 = vector.broadcast %cst_5 : f32 to vector<8x512xf32>
    %7 = arith.maximumf %5, %6 : vector<8x512xf32>
    %8 = arith.truncf %7 : vector<8x512xf32> to vector<8x512xbf16>
    %c0_6 = arith.constant 0 : index
    %c0_7 = arith.constant 0 : index
    %9 = vector.load %arg4[%c0_6, %c0_7] : memref<512x256xbf16, #tpu.memory_space<vmem>>, vector<512x256xbf16>
    %cst_8 = arith.constant dense<0.000000e+00> : vector<8x256xf32>
    %10 = tpu.matmul %8, %9, %cst_8 {dimension_numbers = #tpu.dot_dimension_numbers<[1], [0], [0], [1], [0, 0, 1, 1], [], []>} : vector<8x512xbf16>, vector<512x256xbf16>, vector<8x256xf32> -> vector<8x256xf32>
    %c0_9 = arith.constant 0 : index
    %c0_10 = arith.constant 0 : index
    %11 = vector.load %arg5[%c0_9, %c0_10] : memref<1x256xf32, #tpu.memory_space<vmem>>, vector<1x256xf32>
    %12 = vector.broadcast %11 : vector<1x256xf32> to vector<8x256xf32>
    %13 = arith.addf %10, %12 : vector<8x256xf32>
    %cst_11 = arith.constant 0.000000e+00 : f32
    %14 = vector.broadcast %cst_11 : f32 to vector<8x256xf32>
    %15 = arith.maximumf %13, %14 : vector<8x256xf32>
    %16 = arith.truncf %15 : vector<8x256xf32> to vector<8x256xbf16>
    %c0_12 = arith.constant 0 : index
    %c0_13 = arith.constant 0 : index
    %17 = vector.load %arg6[%c0_12, %c0_13] : memref<256x128xbf16, #tpu.memory_space<vmem>>, vector<256x128xbf16>
    %cst_14 = arith.constant dense<0.000000e+00> : vector<8x128xf32>
    %18 = tpu.matmul %16, %17, %cst_14 {dimension_numbers = #tpu.dot_dimension_numbers<[1], [0], [0], [1], [0, 0, 1, 1], [], []>} : vector<8x256xbf16>, vector<256x128xbf16>, vector<8x128xf32> -> vector<8x128xf32>
    %c0_15 = arith.constant 0 : index
    %c0_16 = arith.constant 0 : index
    %19 = vector.load %arg7[%c0_15, %c0_16] : memref<1x128xf32, #tpu.memory_space<vmem>>, vector<1x128xf32>
    %20 = vector.broadcast %19 : vector<1x128xf32> to vector<8x128xf32>
    %21 = arith.addf %18, %20 : vector<8x128xf32>
    %cst_17 = arith.constant 0.000000e+00 : f32
    %22 = vector.broadcast %cst_17 : f32 to vector<8x128xf32>
    %23 = arith.maximumf %21, %22 : vector<8x128xf32>
    %24 = arith.truncf %23 : vector<8x128xf32> to vector<8x128xbf16>
    %c0_18 = arith.constant 0 : index
    %c0_19 = arith.constant 0 : index
    %25 = vector.load %arg8[%c0_18, %c0_19] : memref<128x128xbf16, #tpu.memory_space<vmem>>, vector<128x128xbf16>
    %cst_20 = arith.constant dense<0.000000e+00> : vector<8x128xf32>
    %26 = tpu.matmul %24, %25, %cst_20 {dimension_numbers = #tpu.dot_dimension_numbers<[1], [0], [0], [1], [0, 0, 1, 1], [], []>} : vector<8x128xbf16>, vector<128x128xbf16>, vector<8x128xf32> -> vector<8x128xf32>
    %c0_21 = arith.constant 0 : index
    %c0_22 = arith.constant 0 : index
    %27 = vector.load %arg9[%c0_21, %c0_22] : memref<1x128xf32, #tpu.memory_space<vmem>>, vector<1x128xf32>
    %28 = vector.broadcast %27 : vector<1x128xf32> to vector<8x128xf32>
    %29 = arith.addf %26, %28 : vector<8x128xf32>
    %30 = arith.truncf %29 : vector<8x128xf32> to vector<8x128xbf16>
    %c0_23 = arith.constant 0 : index
    %c0_24 = arith.constant 0 : index
    %31 = vector.load %arg10[%c0_23, %c0_24] : memref<8x128xbf16, #tpu.memory_space<vmem>>, vector<8x128xbf16>
    tpu.vector_store %arg10[%c0_23, %c0_24], %30 {strides = array<i32>} : memref<8x128xbf16, #tpu.memory_space<vmem>>, vector<8x128xbf16>,
    return
  }
  func.func @transform_0(%arg0: i32) -> (i32, i32) {
    %c0_i32 = arith.constant 0 : i32
    %c0_i32_0 = arith.constant 0 : i32
    return %arg0, %c0_i32 : i32, i32
  }
  func.func @transform_1(%arg0: i32) -> (i32, i32) {
    %c0_i32 = arith.constant 0 : i32
    %c0_i32_0 = arith.constant 0 : i32
    %c0_i32_1 = arith.constant 0 : i32
    return %c0_i32, %c0_i32_0 : i32, i32
  }
  func.func @transform_2(%arg0: i32) -> (i32, i32) {
    %c0_i32 = arith.constant 0 : i32
    %c0_i32_0 = arith.constant 0 : i32
    %c0_i32_1 = arith.constant 0 : i32
    return %c0_i32, %c0_i32_0 : i32, i32
  }
  func.func @transform_3(%arg0: i32) -> (i32, i32) {
    %c0_i32 = arith.constant 0 : i32
    %c0_i32_0 = arith.constant 0 : i32
    %c0_i32_1 = arith.constant 0 : i32
    return %c0_i32, %c0_i32_0 : i32, i32
  }
  func.func @transform_4(%arg0: i32) -> (i32, i32) {
    %c0_i32 = arith.constant 0 : i32
    %c0_i32_0 = arith.constant 0 : i32
    %c0_i32_1 = arith.constant 0 : i32
    return %c0_i32, %c0_i32_0 : i32, i32
  }
  func.func @transform_5(%arg0: i32) -> (i32, i32) {
    %c0_i32 = arith.constant 0 : i32
    %c0_i32_0 = arith.constant 0 : i32
    %c0_i32_1 = arith.constant 0 : i32
    return %c0_i32, %c0_i32_0 : i32, i32
  }
  func.func @transform_6(%arg0: i32) -> (i32, i32) {
    %c0_i32 = arith.constant 0 : i32
    %c0_i32_0 = arith.constant 0 : i32
    %c0_i32_1 = arith.constant 0 : i32
    return %c0_i32, %c0_i32_0 : i32, i32
  }
  func.func @transform_7(%arg0: i32) -> (i32, i32) {
    %c0_i32 = arith.constant 0 : i32
    %c0_i32_0 = arith.constant 0 : i32
    %c0_i32_1 = arith.constant 0 : i32
    return %c0_i32, %c0_i32_0 : i32, i32
  }
  func.func @transform_8(%arg0: i32) -> (i32, i32) {
    %c0_i32 = arith.constant 0 : i32
    %c0_i32_0 = arith.constant 0 : i32
    %c0_i32_1 = arith.constant 0 : i32
    return %c0_i32, %c0_i32_0 : i32, i32
  }
  func.func @transform_9(%arg0: i32) -> (i32, i32) {
    %c0_i32 = arith.constant 0 : i32
    %c0_i32_0 = arith.constant 0 : i32
    return %arg0, %c0_i32 : i32, i32
  }
}

</mosaic_0001>

<llo_original>
// kernel: simple_classifier.1
$region0: #{simple_classifier.1}
  #allocation0 [shape = 'u32[]', space=smem, size = 0x4, offset = 0x4, fixed_abs, tag = 'smem constant byte address 0x4 - core index']
  #allocation1 [shape = 'u32[144,128]{1,0:T(1,128)}', space=vmem, size = 0x12000, scoped, tag = 'internal scratch']
  %s0 = inlined_call_operand.hbm [shape: bf16[8,1404], index: 0, kind: input, shape index: {}]
  %s1 = inlined_call_operand.hbm [shape: bf16[1404,512], index: 1, kind: input, shape index: {}]
  %s2 = inlined_call_operand.hbm [shape: f32[1,512], index: 2, kind: input, shape index: {}]
  %s3 = inlined_call_operand.hbm [shape: bf16[512,256], index: 3, kind: input, shape index: {}]
  %s4 = inlined_call_operand.hbm [shape: f32[1,256], index: 4, kind: input, shape index: {}]
  %s5 = inlined_call_operand.hbm [shape: bf16[256,128], index: 5, kind: input, shape index: {}]
  %s6 = inlined_call_operand.hbm [shape: f32[1,128], index: 6, kind: input, shape index: {}]
  %s7 = inlined_call_operand.hbm [shape: bf16[128,128], index: 7, kind: input, shape index: {}]
  %s8 = inlined_call_operand.hbm [shape: f32[1,128], index: 8, kind: input, shape index: {}]
  %s9 = inlined_call_operand.vmem [shape: bf16[8,128], index: 9, kind: output, shape index: {}]
  %s10 = sld [smem:[#allocation0]]
  $region82: #{simple_classifier.1} parent=0
    _
  %s12 = ssub.s32 1, %s10
  %s13 = scalar_select 0, %s12, %s10
  $region1: #{simple_classifier.1} parent=0
    #allocation2 [shape = 'u8[22528]{0}', space=vmem, size = 0x5800, scoped, tag = 'input window, operand 0, single buffered']
    #allocation3 [shape = 's32[1]{0}', space=sflag, size = 0x4, scoped, tag = 'scoped memory for simple_classifier.1']
    #allocation4 [shape = 'u8[1441792]{0}', space=vmem, size = 0x160000, scoped, tag = 'input window, operand 1, single buffered']
    #allocation5 [shape = 's32[1]{0}', space=sflag, size = 0x4, scoped, tag = 'scoped memory for simple_classifier.1']
    #allocation6 [shape = 'u8[2048]{0}', space=vmem, size = 0x800, scoped, tag = 'input window, operand 2, single buffered']
    #allocation7 [shape = 'u8[262144]{0}', space=vmem, size = 0x40000, scoped, tag = 'input window, operand 3, single buffered']
    #allocation8 [shape = 's32[1]{0}', space=sflag, size = 0x4, scoped, tag = 'scoped memory for simple_classifier.1']
    #allocation9 [shape = 'u8[1024]{0}', space=vmem, size = 0x400, scoped, tag = 'input window, operand 4, single buffered']
    #allocation10 [shape = 'u8[65536]{0}', space=vmem, size = 0x10000, scoped, tag = 'input window, operand 5, single buffered']
    #allocation11 [shape = 's32[1]{0}', space=sflag, size = 0x4, scoped, tag = 'scoped memory for simple_classifier.1']
    #allocation12 [shape = 'u8[512]{0}', space=vmem, size = 0x400, scoped, tag = 'input window, operand 6, single buffered']
    #allocation13 [shape = 'u8[32768]{0}', space=vmem, size = 0x8000, scoped, tag = 'input window, operand 7, single buffered']
    #allocation14 [shape = 's32[1]{0}', space=sflag, size = 0x4, scoped, tag = 'scoped memory for simple_classifier.1']
    #allocation15 [shape = 'u8[512]{0}', space=vmem, size = 0x400, scoped, tag = 'input window, operand 8, single buffered']
    %14 = vsyncpa [#allocation3], 0
    %15 = vsyncpa [#allocation5], 0
    %16 = vsyncpa [#allocation8], 0
    %17 = vsyncpa [#allocation11], 0
    %18 = vsyncpa [#allocation14], 0
    // Predicated region
    $region2: #{simple_classifier.1} parent=1 // pred_check
      _
    $region3: #{simple_classifier.1} parent=1 // pred_check_branch
      %20 = sbr.rel (0) target = $region5
    $region4: #{simple_classifier.1} parent=1 // pred_region
      %s22 = ssub.s32 704, 704
      %23 = vsyncadd [#allocation3], %s22
      %s25 = sshll.u32 [#allocation2], 4
      %s26 = int_to_ptr.vmem [resolvable:$true] %s25
      %28 = dma.hbm_to_vmem [thread:$0]  %s0, 704, %s26, [#allocation3]
    $region5: #{simple_classifier.1} parent=1 // pred_fallthru
      _
    // Predicated region
    $region6: #{simple_classifier.1} parent=1 // pred_check
      _
    $region7: #{simple_classifier.1} parent=1 // pred_check_branch
      %30 = sbr.rel (0) target = $region9
    $region8: #{simple_classifier.1} parent=1 // pred_region
      %s32 = ssub.s32 45056, 45056
      %33 = vsyncadd [#allocation5], %s32
      %s34 = sshll.u32 [#allocation4], 4
      %s35 = int_to_ptr.vmem [resolvable:$true] %s34
      %40 = dma.hbm_to_vmem [thread:$0]  %s1, 45056, %s35, [#allocation5], 256, 256, 16
    $region9: #{simple_classifier.1} parent=1 // pred_fallthru
      _
    // Predicated region
    $region10: #{simple_classifier.1} parent=1 // pred_check
      _
    $region11: #{simple_classifier.1} parent=1 // pred_check_branch
      %42 = sbr.rel (0) target = $region13
    $region12: #{simple_classifier.1} parent=1 // pred_region
      %s44 = ssub.s32 64, 64
      %45 = vsyncadd [#allocation5], %s44
      %s47 = sshll.u32 [#allocation6], 4
      %s48 = int_to_ptr.vmem [resolvable:$true] %s47
      %50 = dma.hbm_to_vmem [thread:$0]  %s2, 64, %s48, [#allocation5]
    $region13: #{simple_classifier.1} parent=1 // pred_fallthru
      _
    // Predicated region
    $region14: #{simple_classifier.1} parent=1 // pred_check
      _
    $region15: #{simple_classifier.1} parent=1 // pred_check_branch
      %52 = sbr.rel (0) target = $region17
    $region16: #{simple_classifier.1} parent=1 // pred_region
      %s54 = ssub.s32 8192, 8192
      %55 = vsyncadd [#allocation8], %s54
      %s56 = sshll.u32 [#allocation7], 4
      %s57 = int_to_ptr.vmem [resolvable:$true] %s56
      %62 = dma.hbm_to_vmem [thread:$0]  %s3, 8192, %s57, [#allocation8], 128, 128, 8
    $region17: #{simple_classifier.1} parent=1 // pred_fallthru
      _
    // Predicated region
    $region18: #{simple_classifier.1} parent=1 // pred_check
      _
    $region19: #{simple_classifier.1} parent=1 // pred_check_branch
      %64 = sbr.rel (0) target = $region21
    $region20: #{simple_classifier.1} parent=1 // pred_region
      %s66 = ssub.s32 32, 32
      %67 = vsyncadd [#allocation8], %s66
      %s69 = sshll.u32 [#allocation9], 4
      %s70 = int_to_ptr.vmem [resolvable:$true] %s69
      %72 = dma.hbm_to_vmem [thread:$0]  %s4, 32, %s70, [#allocation8]
    $region21: #{simple_classifier.1} parent=1 // pred_fallthru
      _
    // Predicated region
    $region22: #{simple_classifier.1} parent=1 // pred_check
      _
    $region23: #{simple_classifier.1} parent=1 // pred_check_branch
      %74 = sbr.rel (0) target = $region25
    $region24: #{simple_classifier.1} parent=1 // pred_region
      %s76 = ssub.s32 2048, 2048
      %77 = vsyncadd [#allocation11], %s76
      %s78 = sshll.u32 [#allocation10], 4
      %s79 = int_to_ptr.vmem [resolvable:$true] %s78
      %84 = dma.hbm_to_vmem [thread:$0]  %s5, 2048, %s79, [#allocation11], 64, 64, 4
    $region25: #{simple_classifier.1} parent=1 // pred_fallthru
      _
    // Predicated region
    $region26: #{simple_classifier.1} parent=1 // pred_check
      _
    $region27: #{simple_classifier.1} parent=1 // pred_check_branch
      %86 = sbr.rel (0) target = $region29
    $region28: #{simple_classifier.1} parent=1 // pred_region
      %s88 = ssub.s32 16, 16
      %89 = vsyncadd [#allocation11], %s88
      %s91 = sshll.u32 [#allocation12], 4
      %s92 = int_to_ptr.vmem [resolvable:$true] %s91
      %94 = dma.hbm_to_vmem [thread:$0]  %s6, 16, %s92, [#allocation11]
    $region29: #{simple_classifier.1} parent=1 // pred_fallthru
      _
    // Predicated region
    $region30: #{simple_classifier.1} parent=1 // pred_check
      _
    $region31: #{simple_classifier.1} parent=1 // pred_check_branch
      %96 = sbr.rel (0) target = $region33
    $region32: #{simple_classifier.1} parent=1 // pred_region
      %s98 = ssub.s32 1024, 1024
      %99 = vsyncadd [#allocation14], %s98
      %s100 = sshll.u32 [#allocation13], 4
      %s101 = int_to_ptr.vmem [resolvable:$true] %s100
      %106 = dma.hbm_to_vmem [thread:$0]  %s7, 1024, %s101, [#allocation14], 64, 64, 4
    $region33: #{simple_classifier.1} parent=1 // pred_fallthru
      _
    // Predicated region
    $region34: #{simple_classifier.1} parent=1 // pred_check
      _
    $region35: #{simple_classifier.1} parent=1 // pred_check_branch
      %108 = sbr.rel (0) target = $region37
    $region36: #{simple_classifier.1} parent=1 // pred_region
      %s110 = ssub.s32 16, 16
      %111 = vsyncadd [#allocation14], %s110
      %s113 = sshll.u32 [#allocation15], 4
      %s114 = int_to_ptr.vmem [resolvable:$true] %s113
      %116 = dma.hbm_to_vmem [thread:$0]  %s8, 16, %s114, [#allocation14]
    $region37: #{simple_classifier.1} parent=1 // pred_fallthru
      _
    // Predicated region
    $region38: #{simple_classifier.1} parent=1 // pred_check
      _
    $region39: #{simple_classifier.1} parent=1 // pred_check_branch
      %118 = sbr.rel (0) target = $region41
    $region40: #{simple_classifier.1} parent=1 // pred_region
      %119 = dma.done [#allocation3], 704
    $region41: #{simple_classifier.1} parent=1 // pred_fallthru
      _
    // Predicated region
    $region42: #{simple_classifier.1} parent=1 // pred_check
      _
    $region43: #{simple_classifier.1} parent=1 // pred_check_branch
      %121 = sbr.rel (0) target = $region45
    $region44: #{simple_classifier.1} parent=1 // pred_region
      %122 = dma.done [#allocation5], 45056
    $region45: #{simple_classifier.1} parent=1 // pred_fallthru
      _
    // Predicated region
    $region46: #{simple_classifier.1} parent=1 // pred_check
      _
    $region47: #{simple_classifier.1} parent=1 // pred_check_branch
      %124 = sbr.rel (0) target = $region49
    $region48: #{simple_classifier.1} parent=1 // pred_region
      %125 = dma.done [#allocation5], 64
    $region49: #{simple_classifier.1} parent=1 // pred_fallthru
      _
    // Predicated region
    $region50: #{simple_classifier.1} parent=1 // pred_check
      _
    $region51: #{simple_classifier.1} parent=1 // pred_check_branch
      %127 = sbr.rel (0) target = $region53
    $region52: #{simple_classifier.1} parent=1 // pred_region
      %128 = dma.done [#allocation8], 8192
    $region53: #{simple_classifier.1} parent=1 // pred_fallthru
      _
    // Predicated region
    $region54: #{simple_classifier.1} parent=1 // pred_check
      _
    $region55: #{simple_classifier.1} parent=1 // pred_check_branch
      %130 = sbr.rel (0) target = $region57
    $region56: #{simple_classifier.1} parent=1 // pred_region
      %131 = dma.done [#allocation8], 32
    $region57: #{simple_classifier.1} parent=1 // pred_fallthru
      _
    // Predicated region
    $region58: #{simple_classifier.1} parent=1 // pred_check
      _
    $region59: #{simple_classifier.1} parent=1 // pred_check_branch
      %133 = sbr.rel (0) target = $region61
    $region60: #{simple_classifier.1} parent=1 // pred_region
      %134 = dma.done [#allocation11], 2048
    $region61: #{simple_classifier.1} parent=1 // pred_fallthru
      _
    // Predicated region
    $region62: #{simple_classifier.1} parent=1 // pred_check
      _
    $region63: #{simple_classifier.1} parent=1 // pred_check_branch
      %136 = sbr.rel (0) target = $region65
    $region64: #{simple_classifier.1} parent=1 // pred_region
      %137 = dma.done [#allocation11], 16
    $region65: #{simple_classifier.1} parent=1 // pred_fallthru
      _
    // Predicated region
    $region66: #{simple_classifier.1} parent=1 // pred_check
      _
    $region67: #{simple_classifier.1} parent=1 // pred_check_branch
      %139 = sbr.rel (0) target = $region69
    $region68: #{simple_classifier.1} parent=1 // pred_region
      %140 = dma.done [#allocation14], 1024
    $region69: #{simple_classifier.1} parent=1 // pred_fallthru
      _
    // Predicated region
    $region70: #{simple_classifier.1} parent=1 // pred_check
      _
    $region71: #{simple_classifier.1} parent=1 // pred_check_branch
      %142 = sbr.rel (0) target = $region73
    $region72: #{simple_classifier.1} parent=1 // pred_region
      %143 = dma.done [#allocation14], 16
    $region73: #{simple_classifier.1} parent=1 // pred_fallthru
      _
    %v145 = vld [vmem:[#allocation2] sm:$0xff]
    %v146 = vld [vmem:[#allocation2 + $0x8] sm:$0xff]
    %v147 = vld [vmem:[#allocation2 + $0x10] sm:$0xff]
    %v148 = vld [vmem:[#allocation2 + $0x18] sm:$0xff]
    %v149 = vld [vmem:[#allocation2 + $0x20] sm:$0xff]
    %v150 = vld [vmem:[#allocation2 + $0x28] sm:$0xf]
    %v151 = vld [vmem:[#allocation4] sm:$0xff]
    %v152 = vld [vmem:[#allocation4 + $0x8] sm:$0xff]
    %v153 = vld [vmem:[#allocation4 + $0x10] sm:$0xff]
    %v154 = vld [vmem:[#allocation4 + $0x18] sm:$0xff]
    %v155 = vld [vmem:[#allocation4 + $0x20] sm:$0xff]
    %v156 = vld [vmem:[#allocation4 + $0x28] sm:$0xff]
    %v157 = vld [vmem:[#allocation4 + $0x30] sm:$0xff]
    %v158 = vld [vmem:[#allocation4 + $0x38] sm:$0xff]
    %v159 = vld [vmem:[#allocation4 + $0x40] sm:$0xff]
    %v160 = vld [vmem:[#allocation4 + $0x48] sm:$0xff]
    %v161 = vld [vmem:[#allocation4 + $0x50] sm:$0xff]
    %v162 = vld [vmem:[#allocation4 + $0x58] sm:$0xff]
    %v163 = vld [vmem:[#allocation4 + $0x60] sm:$0xff]
    %v164 = vld [vmem:[#allocation4 + $0x68] sm:$0xff]
    %v165 = vld [vmem:[#allocation4 + $0x70] sm:$0xff]
    %v166 = vld [vmem:[#allocation4 + $0x78] sm:$0xff]
    %v167 = vld [vmem:[#allocation4 + $0x80] sm:$0xff]
    %v168 = vld [vmem:[#allocation4 + $0x88] sm:$0xff]
    %v169 = vld [vmem:[#allocation4 + $0x90] sm:$0xff]
    %v170 = vld [vmem:[#allocation4 + $0x98] sm:$0xff]
    %v171 = vld [vmem:[#allocation4 + $0xa0] sm:$0xff]
    %v172 = vld [vmem:[#allocation4 + $0xa8] sm:$0xff]
    %v173 = vld [vmem:[#allocation4 + $0xb0] sm:$0xff]
    %v174 = vld [vmem:[#allocation4 + $0xb8] sm:$0xff]
    %v175 = vld [vmem:[#allocation4 + $0xc0] sm:$0xff]
    %v176 = vld [vmem:[#allocation4 + $0xc8] sm:$0xff]
    %v177 = vld [vmem:[#allocation4 + $0xd0] sm:$0xff]
    %v178 = vld [vmem:[#allocation4 + $0xd8] sm:$0xff]
    %v179 = vld [vmem:[#allocation4 + $0xe0] sm:$0xff]
    %v180 = vld [vmem:[#allocation4 + $0xe8] sm:$0xff]
    %v181 = vld [vmem:[#allocation4 + $0xf0] sm:$0xff]
    %v182 = vld [vmem:[#allocation4 + $0xf8] sm:$0xff]
    %v183 = vld [vmem:[#allocation4 + $0x100] sm:$0xff]
    %v184 = vld [vmem:[#allocation4 + $0x108] sm:$0xff]
    %v185 = vld [vmem:[#allocation4 + $0x110] sm:$0xff]
    %v186 = vld [vmem:[#allocation4 + $0x118] sm:$0xff]
    %v187 = vld [vmem:[#allocation4 + $0x120] sm:$0xff]
    %v188 = vld [vmem:[#allocation4 + $0x128] sm:$0xff]
    %v189 = vld [vmem:[#allocation4 + $0x130] sm:$0xff]
    %v190 = vld [vmem:[#allocation4 + $0x138] sm:$0xff]
    %v191 = vld [vmem:[#allocation4 + $0x140] sm:$0xff]
    %v192 = vld [vmem:[#allocation4 + $0x148] sm:$0xff]
    %v193 = vld [vmem:[#allocation4 + $0x150] sm:$0xff]
    %v194 = vld [vmem:[#allocation4 + $0x158] sm:$0xff]
    %v195 = vld [vmem:[#allocation4 + $0x160] sm:$0xff]
    %v196 = vld [vmem:[#allocation4 + $0x168] sm:$0xff]
    %v197 = vld [vmem:[#allocation4 + $0x170] sm:$0xff]
    %v198 = vld [vmem:[#allocation4 + $0x178] sm:$0xff]
    %v199 = vld [vmem:[#allocation4 + $0x180] sm:$0xff]
    %v200 = vld [vmem:[#allocation4 + $0x188] sm:$0xff]
    %v201 = vld [vmem:[#allocation4 + $0x190] sm:$0xff]
    %v202 = vld [vmem:[#allocation4 + $0x198] sm:$0xff]
    %v203 = vld [vmem:[#allocation4 + $0x1a0] sm:$0xff]
    %v204 = vld [vmem:[#allocation4 + $0x1a8] sm:$0xff]
    %v205 = vld [vmem:[#allocation4 + $0x1b0] sm:$0xff]
    %v206 = vld [vmem:[#allocation4 + $0x1b8] sm:$0xff]
    %v207 = vld [vmem:[#allocation4 + $0x1c0] sm:$0xff]
    %v208 = vld [vmem:[#allocation4 + $0x1c8] sm:$0xff]
    %v209 = vld [vmem:[#allocation4 + $0x1d0] sm:$0xff]
    %v210 = vld [vmem:[#allocation4 + $0x1d8] sm:$0xff]
    %v211 = vld [vmem:[#allocation4 + $0x1e0] sm:$0xff]
    %v212 = vld [vmem:[#allocation4 + $0x1e8] sm:$0xff]
    %v213 = vld [vmem:[#allocation4 + $0x1f0] sm:$0xff]
    %v214 = vld [vmem:[#allocation4 + $0x1f8] sm:$0xff]
    %v215 = vld [vmem:[#allocation4 + $0x200] sm:$0xff]
    %v216 = vld [vmem:[#allocation4 + $0x208] sm:$0xff]
    %v217 = vld [vmem:[#allocation4 + $0x210] sm:$0xff]
    %v218 = vld [vmem:[#allocation4 + $0x218] sm:$0xff]
    %v219 = vld [vmem:[#allocation4 + $0x220] sm:$0xff]
    %v220 = vld [vmem:[#allocation4 + $0x228] sm:$0xff]
    %v221 = vld [vmem:[#allocation4 + $0x230] sm:$0xff]
    %v222 = vld [vmem:[#allocation4 + $0x238] sm:$0xff]
    %v223 = vld [vmem:[#allocation4 + $0x240] sm:$0xff]
    %v224 = vld [vmem:[#allocation4 + $0x248] sm:$0xff]
    %v225 = vld [vmem:[#allocation4 + $0x250] sm:$0xff]
    %v226 = vld [vmem:[#allocation4 + $0x258] sm:$0xff]
    %v227 = vld [vmem:[#allocation4 + $0x260] sm:$0xff]
    %v228 = vld [vmem:[#allocation4 + $0x268] sm:$0xff]
    %v229 = vld [vmem:[#allocation4 + $0x270] sm:$0xff]
    %v230 = vld [vmem:[#allocation4 + $0x278] sm:$0xff]
    %v231 = vld [vmem:[#allocation4 + $0x280] sm:$0xff]
    %v232 = vld [vmem:[#allocation4 + $0x288] sm:$0xff]
    %v233 = vld [vmem:[#allocation4 + $0x290] sm:$0xff]
    %v234 = vld [vmem:[#allocation4 + $0x298] sm:$0xff]
    %v235 = vld [vmem:[#allocation4 + $0x2a0] sm:$0xff]
    %v236 = vld [vmem:[#allocation4 + $0x2a8] sm:$0xff]
    %v237 = vld [vmem:[#allocation4 + $0x2b0] sm:$0xff]
    %v238 = vld [vmem:[#allocation4 + $0x2b8] sm:$0xff]
    %v239 = vld [vmem:[#allocation4 + $0x2c0] sm:$0xff]
    %v240 = vld [vmem:[#allocation4 + $0x2c8] sm:$0xff]
    %v241 = vld [vmem:[#allocation4 + $0x2d0] sm:$0xff]
    %v242 = vld [vmem:[#allocation4 + $0x2d8] sm:$0xff]
    %v243 = vld [vmem:[#allocation4 + $0x2e0] sm:$0xff]
    %v244 = vld [vmem:[#allocation4 + $0x2e8] sm:$0xff]
    %v245 = vld [vmem:[#allocation4 + $0x2f0] sm:$0xff]
    %v246 = vld [vmem:[#allocation4 + $0x2f8] sm:$0xff]
    %v247 = vld [vmem:[#allocation4 + $0x300] sm:$0xff]
    %v248 = vld [vmem:[#allocation4 + $0x308] sm:$0xff]
    %v249 = vld [vmem:[#allocation4 + $0x310] sm:$0xff]
    %v250 = vld [vmem:[#allocation4 + $0x318] sm:$0xff]
    %v251 = vld [vmem:[#allocation4 + $0x320] sm:$0xff]
    %v252 = vld [vmem:[#allocation4 + $0x328] sm:$0xff]
    %v253 = vld [vmem:[#allocation4 + $0x330] sm:$0xff]
    %v254 = vld [vmem:[#allocation4 + $0x338] sm:$0xff]
    %v255 = vld [vmem:[#allocation4 + $0x340] sm:$0xff]
    %v256 = vld [vmem:[#allocation4 + $0x348] sm:$0xff]
    %v257 = vld [vmem:[#allocation4 + $0x350] sm:$0xff]
    %v258 = vld [vmem:[#allocation4 + $0x358] sm:$0xff]
    %v259 = vld [vmem:[#allocation4 + $0x360] sm:$0xff]
    %v260 = vld [vmem:[#allocation4 + $0x368] sm:$0xff]
    %v261 = vld [vmem:[#allocation4 + $0x370] sm:$0xff]
    %v262 = vld [vmem:[#allocation4 + $0x378] sm:$0xff]
    %v263 = vld [vmem:[#allocation4 + $0x380] sm:$0xff]
    %v264 = vld [vmem:[#allocation4 + $0x388] sm:$0xff]
    %v265 = vld [vmem:[#allocation4 + $0x390] sm:$0xff]
    %v266 = vld [vmem:[#allocation4 + $0x398] sm:$0xff]
    %v267 = vld [vmem:[#allocation4 + $0x3a0] sm:$0xff]
    %v268 = vld [vmem:[#allocation4 + $0x3a8] sm:$0xff]
    %v269 = vld [vmem:[#allocation4 + $0x3b0] sm:$0xff]
    %v270 = vld [vmem:[#allocation4 + $0x3b8] sm:$0xff]
    %v271 = vld [vmem:[#allocation4 + $0x3c0] sm:$0xff]
    %v272 = vld [vmem:[#allocation4 + $0x3c8] sm:$0xff]
    %v273 = vld [vmem:[#allocation4 + $0x3d0] sm:$0xff]
    %v274 = vld [vmem:[#allocation4 + $0x3d8] sm:$0xff]
    %v275 = vld [vmem:[#allocation4 + $0x3e0] sm:$0xff]
    %v276 = vld [vmem:[#allocation4 + $0x3e8] sm:$0xff]
    %v277 = vld [vmem:[#allocation4 + $0x3f0] sm:$0xff]
    %v278 = vld [vmem:[#allocation4 + $0x3f8] sm:$0xff]
    %v279 = vld [vmem:[#allocation4 + $0x400] sm:$0xff]
    %v280 = vld [vmem:[#allocation4 + $0x408] sm:$0xff]
    %v281 = vld [vmem:[#allocation4 + $0x410] sm:$0xff]
    %v282 = vld [vmem:[#allocation4 + $0x418] sm:$0xff]
    %v283 = vld [vmem:[#allocation4 + $0x420] sm:$0xff]
    %v284 = vld [vmem:[#allocation4 + $0x428] sm:$0xff]
    %v285 = vld [vmem:[#allocation4 + $0x430] sm:$0xff]
    %v286 = vld [vmem:[#allocation4 + $0x438] sm:$0xff]
    %v287 = vld [vmem:[#allocation4 + $0x440] sm:$0xff]
    %v288 = vld [vmem:[#allocation4 + $0x448] sm:$0xff]
    %v289 = vld [vmem:[#allocation4 + $0x450] sm:$0xff]
    %v290 = vld [vmem:[#allocation4 + $0x458] sm:$0xff]
    %v291 = vld [vmem:[#allocation4 + $0x460] sm:$0xff]
    %v292 = vld [vmem:[#allocation4 + $0x468] sm:$0xff]
    %v293 = vld [vmem:[#allocation4 + $0x470] sm:$0xff]
    %v294 = vld [vmem:[#allocation4 + $0x478] sm:$0xff]
    %v295 = vld [vmem:[#allocation4 + $0x480] sm:$0xff]
    %v296 = vld [vmem:[#allocation4 + $0x488] sm:$0xff]
    %v297 = vld [vmem:[#allocation4 + $0x490] sm:$0xff]
    %v298 = vld [vmem:[#allocation4 + $0x498] sm:$0xff]
    %v299 = vld [vmem:[#allocation4 + $0x4a0] sm:$0xff]
    %v300 = vld [vmem:[#allocation4 + $0x4a8] sm:$0xff]
    %v301 = vld [vmem:[#allocation4 + $0x4b0] sm:$0xff]
    %v302 = vld [vmem:[#allocation4 + $0x4b8] sm:$0xff]
    %v303 = vld [vmem:[#allocation4 + $0x4c0] sm:$0xff]
    %v304 = vld [vmem:[#allocation4 + $0x4c8] sm:$0xff]
    %v305 = vld [vmem:[#allocation4 + $0x4d0] sm:$0xff]
    %v306 = vld [vmem:[#allocation4 + $0x4d8] sm:$0xff]
    %v307 = vld [vmem:[#allocation4 + $0x4e0] sm:$0xff]
    %v308 = vld [vmem:[#allocation4 + $0x4e8] sm:$0xff]
    %v309 = vld [vmem:[#allocation4 + $0x4f0] sm:$0xff]
    %v310 = vld [vmem:[#allocation4 + $0x4f8] sm:$0xff]
    %v311 = vld [vmem:[#allocation4 + $0x500] sm:$0xff]
    %v312 = vld [vmem:[#allocation4 + $0x508] sm:$0xff]
    %v313 = vld [vmem:[#allocation4 + $0x510] sm:$0xff]
    %v314 = vld [vmem:[#allocation4 + $0x518] sm:$0xff]
    %v315 = vld [vmem:[#allocation4 + $0x520] sm:$0xff]
    %v316 = vld [vmem:[#allocation4 + $0x528] sm:$0xff]
    %v317 = vld [vmem:[#allocation4 + $0x530] sm:$0xff]
    %v318 = vld [vmem:[#allocation4 + $0x538] sm:$0xff]
    %v319 = vld [vmem:[#allocation4 + $0x540] sm:$0xff]
    %v320 = vld [vmem:[#allocation4 + $0x548] sm:$0xff]
    %v321 = vld [vmem:[#allocation4 + $0x550] sm:$0xff]
    %v322 = vld [vmem:[#allocation4 + $0x558] sm:$0xff]
    %v323 = vld [vmem:[#allocation4 + $0x560] sm:$0xff]
    %v324 = vld [vmem:[#allocation4 + $0x568] sm:$0xff]
    %v325 = vld [vmem:[#allocation4 + $0x570] sm:$0xff]
    %v326 = vld [vmem:[#allocation4 + $0x578] sm:$0xff]
    %v327 = vld [vmem:[#allocation4 + $0x580] sm:$0xff]
    %v328 = vld [vmem:[#allocation4 + $0x588] sm:$0xff]
    %v329 = vld [vmem:[#allocation4 + $0x590] sm:$0xff]
    %v330 = vld [vmem:[#allocation4 + $0x598] sm:$0xff]
    %v331 = vld [vmem:[#allocation4 + $0x5a0] sm:$0xff]
    %v332 = vld [vmem:[#allocation4 + $0x5a8] sm:$0xff]
    %v333 = vld [vmem:[#allocation4 + $0x5b0] sm:$0xff]
    %v334 = vld [vmem:[#allocation4 + $0x5b8] sm:$0xff]
    %v335 = vld [vmem:[#allocation4 + $0x5c0] sm:$0xff]
    %v336 = vld [vmem:[#allocation4 + $0x5c8] sm:$0xff]
    %v337 = vld [vmem:[#allocation4 + $0x5d0] sm:$0xff]
    %v338 = vld [vmem:[#allocation4 + $0x5d8] sm:$0xff]
    %v339 = vld [vmem:[#allocation4 + $0x5e0] sm:$0xff]
    %v340 = vld [vmem:[#allocation4 + $0x5e8] sm:$0xff]
    %v341 = vld [vmem:[#allocation4 + $0x5f0] sm:$0xff]
    %v342 = vld [vmem:[#allocation4 + $0x5f8] sm:$0xff]
    %v343 = vld [vmem:[#allocation4 + $0x600] sm:$0xff]
    %v344 = vld [vmem:[#allocation4 + $0x608] sm:$0xff]
    %v345 = vld [vmem:[#allocation4 + $0x610] sm:$0xff]
    %v346 = vld [vmem:[#allocation4 + $0x618] sm:$0xff]
    %v347 = vld [vmem:[#allocation4 + $0x620] sm:$0xff]
    %v348 = vld [vmem:[#allocation4 + $0x628] sm:$0xff]
    %v349 = vld [vmem:[#allocation4 + $0x630] sm:$0xff]
    %v350 = vld [vmem:[#allocation4 + $0x638] sm:$0xff]
    %v351 = vld [vmem:[#allocation4 + $0x640] sm:$0xff]
    %v352 = vld [vmem:[#allocation4 + $0x648] sm:$0xff]
    %v353 = vld [vmem:[#allocation4 + $0x650] sm:$0xff]
    %v354 = vld [vmem:[#allocation4 + $0x658] sm:$0xff]
    %v355 = vld [vmem:[#allocation4 + $0x660] sm:$0xff]
    %v356 = vld [vmem:[#allocation4 + $0x668] sm:$0xff]
    %v357 = vld [vmem:[#allocation4 + $0x670] sm:$0xff]
    %v358 = vld [vmem:[#allocation4 + $0x678] sm:$0xff]
    %v359 = vld [vmem:[#allocation4 + $0x680] sm:$0xff]
    %v360 = vld [vmem:[#allocation4 + $0x688] sm:$0xff]
    %v361 = vld [vmem:[#allocation4 + $0x690] sm:$0xff]
    %v362 = vld [vmem:[#allocation4 + $0x698] sm:$0xff]
    %v363 = vld [vmem:[#allocation4 + $0x6a0] sm:$0xff]
    %v364 = vld [vmem:[#allocation4 + $0x6a8] sm:$0xff]
    %v365 = vld [vmem:[#allocation4 + $0x6b0] sm:$0xff]
    %v366 = vld [vmem:[#allocation4 + $0x6b8] sm:$0xff]
    %v367 = vld [vmem:[#allocation4 + $0x6c0] sm:$0xff]
    %v368 = vld [vmem:[#allocation4 + $0x6c8] sm:$0xff]
    %v369 = vld [vmem:[#allocation4 + $0x6d0] sm:$0xff]
    %v370 = vld [vmem:[#allocation4 + $0x6d8] sm:$0xff]
    %v371 = vld [vmem:[#allocation4 + $0x6e0] sm:$0xff]
    %v372 = vld [vmem:[#allocation4 + $0x6e8] sm:$0xff]
    %v373 = vld [vmem:[#allocation4 + $0x6f0] sm:$0xff]
    %v374 = vld [vmem:[#allocation4 + $0x6f8] sm:$0xff]
    %v375 = vld [vmem:[#allocation4 + $0x700] sm:$0xff]
    %v376 = vld [vmem:[#allocation4 + $0x708] sm:$0xff]
    %v377 = vld [vmem:[#allocation4 + $0x710] sm:$0xff]
    %v378 = vld [vmem:[#allocation4 + $0x718] sm:$0xff]
    %v379 = vld [vmem:[#allocation4 + $0x720] sm:$0xff]
    %v380 = vld [vmem:[#allocation4 + $0x728] sm:$0xff]
    %v381 = vld [vmem:[#allocation4 + $0x730] sm:$0xff]
    %v382 = vld [vmem:[#allocation4 + $0x738] sm:$0xff]
    %v383 = vld [vmem:[#allocation4 + $0x740] sm:$0xff]
    %v384 = vld [vmem:[#allocation4 + $0x748] sm:$0xff]
    %v385 = vld [vmem:[#allocation4 + $0x750] sm:$0xff]
    %v386 = vld [vmem:[#allocation4 + $0x758] sm:$0xff]
    %v387 = vld [vmem:[#allocation4 + $0x760] sm:$0xff]
    %v388 = vld [vmem:[#allocation4 + $0x768] sm:$0xff]
    %v389 = vld [vmem:[#allocation4 + $0x770] sm:$0xff]
    %v390 = vld [vmem:[#allocation4 + $0x778] sm:$0xff]
    %v391 = vld [vmem:[#allocation4 + $0x780] sm:$0xff]
    %v392 = vld [vmem:[#allocation4 + $0x788] sm:$0xff]
    %v393 = vld [vmem:[#allocation4 + $0x790] sm:$0xff]
    %v394 = vld [vmem:[#allocation4 + $0x798] sm:$0xff]
    %v395 = vld [vmem:[#allocation4 + $0x7a0] sm:$0xff]
    %v396 = vld [vmem:[#allocation4 + $0x7a8] sm:$0xff]
    %v397 = vld [vmem:[#allocation4 + $0x7b0] sm:$0xff]
    %v398 = vld [vmem:[#allocation4 + $0x7b8] sm:$0xff]
    %v399 = vld [vmem:[#allocation4 + $0x7c0] sm:$0xff]
    %v400 = vld [vmem:[#allocation4 + $0x7c8] sm:$0xff]
    %v401 = vld [vmem:[#allocation4 + $0x7d0] sm:$0xff]
    %v402 = vld [vmem:[#allocation4 + $0x7d8] sm:$0xff]
    %v403 = vld [vmem:[#allocation4 + $0x7e0] sm:$0xff]
    %v404 = vld [vmem:[#allocation4 + $0x7e8] sm:$0xff]
    %v405 = vld [vmem:[#allocation4 + $0x7f0] sm:$0xff]
    %v406 = vld [vmem:[#allocation4 + $0x7f8] sm:$0xff]
    %v407 = vld [vmem:[#allocation4 + $0x800] sm:$0xff]
    %v408 = vld [vmem:[#allocation4 + $0x808] sm:$0xff]
    %v409 = vld [vmem:[#allocation4 + $0x810] sm:$0xff]
    %v410 = vld [vmem:[#allocation4 + $0x818] sm:$0xff]
    %v411 = vld [vmem:[#allocation4 + $0x820] sm:$0xff]
    %v412 = vld [vmem:[#allocation4 + $0x828] sm:$0xff]
    %v413 = vld [vmem:[#allocation4 + $0x830] sm:$0xff]
    %v414 = vld [vmem:[#allocation4 + $0x838] sm:$0xff]
    %v415 = vld [vmem:[#allocation4 + $0x840] sm:$0xff]
    %v416 = vld [vmem:[#allocation4 + $0x848] sm:$0xff]
    %v417 = vld [vmem:[#allocation4 + $0x850] sm:$0xff]
    %v418 = vld [vmem:[#allocation4 + $0x858] sm:$0xff]
    %v419 = vld [vmem:[#allocation4 + $0x860] sm:$0xff]
    %v420 = vld [vmem:[#allocation4 + $0x868] sm:$0xff]
    %v421 = vld [vmem:[#allocation4 + $0x870] sm:$0xff]
    %v422 = vld [vmem:[#allocation4 + $0x878] sm:$0xff]
    %v423 = vld [vmem:[#allocation4 + $0x880] sm:$0xff]
    %v424 = vld [vmem:[#allocation4 + $0x888] sm:$0xff]
    %v425 = vld [vmem:[#allocation4 + $0x890] sm:$0xff]
    %v426 = vld [vmem:[#allocation4 + $0x898] sm:$0xff]
    %v427 = vld [vmem:[#allocation4 + $0x8a0] sm:$0xff]
    %v428 = vld [vmem:[#allocation4 + $0x8a8] sm:$0xff]
    %v429 = vld [vmem:[#allocation4 + $0x8b0] sm:$0xff]
    %v430 = vld [vmem:[#allocation4 + $0x8b8] sm:$0xff]
    %v431 = vld [vmem:[#allocation4 + $0x8c0] sm:$0xff]
    %v432 = vld [vmem:[#allocation4 + $0x8c8] sm:$0xff]
    %v433 = vld [vmem:[#allocation4 + $0x8d0] sm:$0xff]
    %v434 = vld [vmem:[#allocation4 + $0x8d8] sm:$0xff]
    %v435 = vld [vmem:[#allocation4 + $0x8e0] sm:$0xff]
    %v436 = vld [vmem:[#allocation4 + $0x8e8] sm:$0xff]
    %v437 = vld [vmem:[#allocation4 + $0x8f0] sm:$0xff]
    %v438 = vld [vmem:[#allocation4 + $0x8f8] sm:$0xff]
    %v439 = vld [vmem:[#allocation4 + $0x900] sm:$0xff]
    %v440 = vld [vmem:[#allocation4 + $0x908] sm:$0xff]
    %v441 = vld [vmem:[#allocation4 + $0x910] sm:$0xff]
    %v442 = vld [vmem:[#allocation4 + $0x918] sm:$0xff]
    %v443 = vld [vmem:[#allocation4 + $0x920] sm:$0xff]
    %v444 = vld [vmem:[#allocation4 + $0x928] sm:$0xff]
    %v445 = vld [vmem:[#allocation4 + $0x930] sm:$0xff]
    %v446 = vld [vmem:[#allocation4 + $0x938] sm:$0xff]
    %v447 = vld [vmem:[#allocation4 + $0x940] sm:$0xff]
    %v448 = vld [vmem:[#allocation4 + $0x948] sm:$0xff]
    %v449 = vld [vmem:[#allocation4 + $0x950] sm:$0xff]
    %v450 = vld [vmem:[#allocation4 + $0x958] sm:$0xff]
    %v451 = vld [vmem:[#allocation4 + $0x960] sm:$0xff]
    %v452 = vld [vmem:[#allocation4 + $0x968] sm:$0xff]
    %v453 = vld [vmem:[#allocation4 + $0x970] sm:$0xff]
    %v454 = vld [vmem:[#allocation4 + $0x978] sm:$0xff]
    %v455 = vld [vmem:[#allocation4 + $0x980] sm:$0xff]
    %v456 = vld [vmem:[#allocation4 + $0x988] sm:$0xff]
    %v457 = vld [vmem:[#allocation4 + $0x990] sm:$0xff]
    %v458 = vld [vmem:[#allocation4 + $0x998] sm:$0xff]
    %v459 = vld [vmem:[#allocation4 + $0x9a0] sm:$0xff]
    %v460 = vld [vmem:[#allocation4 + $0x9a8] sm:$0xff]
    %v461 = vld [vmem:[#allocation4 + $0x9b0] sm:$0xff]
    %v462 = vld [vmem:[#allocation4 + $0x9b8] sm:$0xff]
    %v463 = vld [vmem:[#allocation4 + $0x9c0] sm:$0xff]
    %v464 = vld [vmem:[#allocation4 + $0x9c8] sm:$0xff]
    %v465 = vld [vmem:[#allocation4 + $0x9d0] sm:$0xff]
    %v466 = vld [vmem:[#allocation4 + $0x9d8] sm:$0xff]
    %v467 = vld [vmem:[#allocation4 + $0x9e0] sm:$0xff]
    %v468 = vld [vmem:[#allocation4 + $0x9e8] sm:$0xff]
    %v469 = vld [vmem:[#allocation4 + $0x9f0] sm:$0xff]
    %v470 = vld [vmem:[#allocation4 + $0x9f8] sm:$0xff]
    %v471 = vld [vmem:[#allocation4 + $0xa00] sm:$0xff]
    %v472 = vld [vmem:[#allocation4 + $0xa08] sm:$0xff]
    %v473 = vld [vmem:[#allocation4 + $0xa10] sm:$0xff]
    %v474 = vld [vmem:[#allocation4 + $0xa18] sm:$0xff]
    %v475 = vld [vmem:[#allocation4 + $0xa20] sm:$0xff]
    %v476 = vld [vmem:[#allocation4 + $0xa28] sm:$0xff]
    %v477 = vld [vmem:[#allocation4 + $0xa30] sm:$0xff]
    %v478 = vld [vmem:[#allocation4 + $0xa38] sm:$0xff]
    %v479 = vld [vmem:[#allocation4 + $0xa40] sm:$0xff]
    %v480 = vld [vmem:[#allocation4 + $0xa48] sm:$0xff]
    %v481 = vld [vmem:[#allocation4 + $0xa50] sm:$0xff]
    %v482 = vld [vmem:[#allocation4 + $0xa58] sm:$0xff]
    %v483 = vld [vmem:[#allocation4 + $0xa60] sm:$0xff]
    %v484 = vld [vmem:[#allocation4 + $0xa68] sm:$0xff]
    %v485 = vld [vmem:[#allocation4 + $0xa70] sm:$0xff]
    %v486 = vld [vmem:[#allocation4 + $0xa78] sm:$0xff]
    %v487 = vld [vmem:[#allocation4 + $0xa80] sm:$0xff]
    %v488 = vld [vmem:[#allocation4 + $0xa88] sm:$0xff]
    %v489 = vld [vmem:[#allocation4 + $0xa90] sm:$0xff]
    %v490 = vld [vmem:[#allocation4 + $0xa98] sm:$0xff]
    %v491 = vld [vmem:[#allocation4 + $0xaa0] sm:$0xff]
    %v492 = vld [vmem:[#allocation4 + $0xaa8] sm:$0xff]
    %v493 = vld [vmem:[#allocation4 + $0xab0] sm:$0xff]
    %v494 = vld [vmem:[#allocation4 + $0xab8] sm:$0xff]
    %v495 = vld [vmem:[#allocation4 + $0xac0] sm:$0xff]
    %v496 = vld [vmem:[#allocation4 + $0xac8] sm:$0xff]
    %v497 = vld [vmem:[#allocation4 + $0xad0] sm:$0xff]
    %v498 = vld [vmem:[#allocation4 + $0xad8] sm:$0xff]
    %v499 = vld [vmem:[#allocation4 + $0xae0] sm:$0xff]
    %v500 = vld [vmem:[#allocation4 + $0xae8] sm:$0xff]
    %v501 = vld [vmem:[#allocation4 + $0xaf0] sm:$0x33]
    %v502 = vld [vmem:[#allocation4 + $0xaf8] sm:$0x33]
    %v503 = vld [vmem:[#allocation6] sm:$0xf]
    %v505 = vlaneseq
    %v506 = vshrl.u32 %v505, 7
    %v507 = vsub.s32 0, %v506
    %v508 = vrot.slane %v503, %v507
    %v509 = vlaneseq
    %v510 = vshrl.u32 %v509, 7
    %v511 = vsub.s32 1, %v510
    %v512 = vrot.slane %v503, %v511
    %v513 = vlaneseq
    %v514 = vshrl.u32 %v513, 7
    %v515 = vsub.s32 2, %v514
    %v516 = vrot.slane %v503, %v515
    %v517 = vlaneseq
    %v518 = vshrl.u32 %v517, 7
    %v519 = vsub.s32 3, %v518
    %v520 = vrot.slane %v503, %v519
    %v531 = vunpack.c.l.b16 %v145
    %v532 = vunpack.c.h.b16 %v145
    %v533 = vunpack.c.l.b16 %v146
    %v534 = vunpack.c.h.b16 %v146
    %v535 = vunpack.c.l.b16 %v147
    %v536 = vunpack.c.h.b16 %v147
    %v537 = vunpack.c.l.b16 %v148
    %v538 = vunpack.c.h.b16 %v148
    %v539 = vunpack.c.l.b16 %v149
    %v540 = vunpack.c.h.b16 %v149
    %v541 = vunpack.c.l.b16 %v150
    %v542 = vpack.c.b16 %v531, %v531
    %v543 = vpack.c.b16 %v532, %v532
    %v544 = vpack.c.b16 %v533, %v533
    %v545 = vpack.c.b16 %v534, %v534
    %v546 = vpack.c.b16 %v535, %v535
    %v547 = vpack.c.b16 %v536, %v536
    %v548 = vpack.c.b16 %v537, %v537
    %v549 = vpack.c.b16 %v538, %v538
    %v550 = vpack.c.b16 %v539, %v539
    %v551 = vpack.c.b16 %v540, %v540
    %v552 = vpack.c.b16 %v541, %v541
    %v915 = vunpack.c.l.b16 %v151
    %v916 = vunpack.c.h.b16 %v151
    %v917 = vunpack.c.l.b16 %v152
    %v918 = vunpack.c.h.b16 %v152
    %v919 = vunpack.c.l.b16 %v153
    %v920 = vunpack.c.h.b16 %v153
    %v921 = vunpack.c.l.b16 %v154
    %v922 = vunpack.c.h.b16 %v154
    %v923 = vunpack.c.l.b16 %v155
    %v924 = vunpack.c.h.b16 %v155
    %v925 = vunpack.c.l.b16 %v156
    %v926 = vunpack.c.h.b16 %v156
    %v927 = vunpack.c.l.b16 %v157
    %v928 = vunpack.c.h.b16 %v157
    %v929 = vunpack.c.l.b16 %v158
    %v930 = vunpack.c.h.b16 %v158
    %v931 = vunpack.c.l.b16 %v159
    %v932 = vunpack.c.h.b16 %v159
    %v933 = vunpack.c.l.b16 %v160
    %v934 = vunpack.c.h.b16 %v160
    %v935 = vunpack.c.l.b16 %v161
    %v936 = vunpack.c.h.b16 %v161
    %v937 = vunpack.c.l.b16 %v162
    %v938 = vunpack.c.h.b16 %v162
    %v939 = vunpack.c.l.b16 %v163
    %v940 = vunpack.c.h.b16 %v163
    %v941 = vunpack.c.l.b16 %v164
    %v942 = vunpack.c.h.b16 %v164
    %v943 = vunpack.c.l.b16 %v165
    %v944 = vunpack.c.h.b16 %v165
    %v945 = vunpack.c.l.b16 %v166
    %v946 = vunpack.c.h.b16 %v166
    %v947 = vunpack.c.l.b16 %v167
    %v948 = vunpack.c.h.b16 %v167
    %v949 = vunpack.c.l.b16 %v168
    %v950 = vunpack.c.h.b16 %v168
    %v951 = vunpack.c.l.b16 %v169
    %v952 = vunpack.c.h.b16 %v169
    %v953 = vunpack.c.l.b16 %v170
    %v954 = vunpack.c.h.b16 %v170
    %v955 = vunpack.c.l.b16 %v171
    %v956 = vunpack.c.h.b16 %v171
    %v957 = vunpack.c.l.b16 %v172
    %v958 = vunpack.c.h.b16 %v172
    %v959 = vunpack.c.l.b16 %v173
    %v960 = vunpack.c.h.b16 %v173
    %v961 = vunpack.c.l.b16 %v174
    %v962 = vunpack.c.h.b16 %v174
    %v963 = vunpack.c.l.b16 %v175
    %v964 = vunpack.c.h.b16 %v175
    %v965 = vunpack.c.l.b16 %v176
    %v966 = vunpack.c.h.b16 %v176
    %v967 = vunpack.c.l.b16 %v177
    %v968 = vunpack.c.h.b16 %v177
    %v969 = vunpack.c.l.b16 %v178
    %v970 = vunpack.c.h.b16 %v178
    %v971 = vunpack.c.l.b16 %v179
    %v972 = vunpack.c.h.b16 %v179
    %v973 = vunpack.c.l.b16 %v180
    %v974 = vunpack.c.h.b16 %v180
    %v975 = vunpack.c.l.b16 %v181
    %v976 = vunpack.c.h.b16 %v181
    %v977 = vunpack.c.l.b16 %v182
    %v978 = vunpack.c.h.b16 %v182
    %v979 = vunpack.c.l.b16 %v183
    %v980 = vunpack.c.h.b16 %v183
    %v981 = vunpack.c.l.b16 %v184
    %v982 = vunpack.c.h.b16 %v184
    %v983 = vunpack.c.l.b16 %v185
    %v984 = vunpack.c.h.b16 %v185
    %v985 = vunpack.c.l.b16 %v186
    %v986 = vunpack.c.h.b16 %v186
    %v987 = vunpack.c.l.b16 %v187
    %v988 = vunpack.c.h.b16 %v187
    %v989 = vunpack.c.l.b16 %v188
    %v990 = vunpack.c.h.b16 %v188
    %v991 = vunpack.c.l.b16 %v189
    %v992 = vunpack.c.h.b16 %v189
    %v993 = vunpack.c.l.b16 %v190
    %v994 = vunpack.c.h.b16 %v190
    %v995 = vunpack.c.l.b16 %v191
    %v996 = vunpack.c.h.b16 %v191
    %v997 = vunpack.c.l.b16 %v192
    %v998 = vunpack.c.h.b16 %v192
    %v999 = vunpack.c.l.b16 %v193
    %v1000 = vunpack.c.h.b16 %v193
    %v1001 = vunpack.c.l.b16 %v194
    %v1002 = vunpack.c.h.b16 %v194
    %v1003 = vunpack.c.l.b16 %v195
    %v1004 = vunpack.c.h.b16 %v195
    %v1005 = vunpack.c.l.b16 %v196
    %v1006 = vunpack.c.h.b16 %v196
    %v1007 = vunpack.c.l.b16 %v197
    %v1008 = vunpack.c.h.b16 %v197
    %v1009 = vunpack.c.l.b16 %v198
    %v1010 = vunpack.c.h.b16 %v198
    %v1011 = vunpack.c.l.b16 %v199
    %v1012 = vunpack.c.h.b16 %v199
    %v1013 = vunpack.c.l.b16 %v200
    %v1014 = vunpack.c.h.b16 %v200
    %v1015 = vunpack.c.l.b16 %v201
    %v1016 = vunpack.c.h.b16 %v201
    %v1017 = vunpack.c.l.b16 %v202
    %v1018 = vunpack.c.h.b16 %v202
    %v1019 = vunpack.c.l.b16 %v203
    %v1020 = vunpack.c.h.b16 %v203
    %v1021 = vunpack.c.l.b16 %v204
    %v1022 = vunpack.c.h.b16 %v204
    %v1023 = vunpack.c.l.b16 %v205
    %v1024 = vunpack.c.h.b16 %v205
    %v1025 = vunpack.c.l.b16 %v206
    %v1026 = vunpack.c.h.b16 %v206
    %v1027 = vunpack.c.l.b16 %v207
    %v1028 = vunpack.c.h.b16 %v207
    %v1029 = vunpack.c.l.b16 %v208
    %v1030 = vunpack.c.h.b16 %v208
    %v1031 = vunpack.c.l.b16 %v209
    %v1032 = vunpack.c.h.b16 %v209
    %v1033 = vunpack.c.l.b16 %v210
    %v1034 = vunpack.c.h.b16 %v210
    %v1035 = vunpack.c.l.b16 %v211
    %v1036 = vunpack.c.h.b16 %v211
    %v1037 = vunpack.c.l.b16 %v212
    %v1038 = vunpack.c.h.b16 %v212
    %v1039 = vunpack.c.l.b16 %v213
    %v1040 = vunpack.c.h.b16 %v213
    %v1041 = vunpack.c.l.b16 %v214
    %v1042 = vunpack.c.h.b16 %v214
    %v1043 = vunpack.c.l.b16 %v215
    %v1044 = vunpack.c.h.b16 %v215
    %v1045 = vunpack.c.l.b16 %v216
    %v1046 = vunpack.c.h.b16 %v216
    %v1047 = vunpack.c.l.b16 %v217
    %v1048 = vunpack.c.h.b16 %v217
    %v1049 = vunpack.c.l.b16 %v218
    %v1050 = vunpack.c.h.b16 %v218
    %v1051 = vunpack.c.l.b16 %v219
    %v1052 = vunpack.c.h.b16 %v219
    %v1053 = vunpack.c.l.b16 %v220
    %v1054 = vunpack.c.h.b16 %v220
    %v1055 = vunpack.c.l.b16 %v221
    %v1056 = vunpack.c.h.b16 %v221
    %v1057 = vunpack.c.l.b16 %v222
    %v1058 = vunpack.c.h.b16 %v222
    %v1059 = vunpack.c.l.b16 %v223
    %v1060 = vunpack.c.h.b16 %v223
    %v1061 = vunpack.c.l.b16 %v224
    %v1062 = vunpack.c.h.b16 %v224
    %v1063 = vunpack.c.l.b16 %v225
    %v1064 = vunpack.c.h.b16 %v225
    %v1065 = vunpack.c.l.b16 %v226
    %v1066 = vunpack.c.h.b16 %v226
    %v1067 = vunpack.c.l.b16 %v227
    %v1068 = vunpack.c.h.b16 %v227
    %v1069 = vunpack.c.l.b16 %v228
    %v1070 = vunpack.c.h.b16 %v228
    %v1071 = vunpack.c.l.b16 %v229
    %v1072 = vunpack.c.h.b16 %v229
    %v1073 = vunpack.c.l.b16 %v230
    %v1074 = vunpack.c.h.b16 %v230
    %v1075 = vunpack.c.l.b16 %v231
    %v1076 = vunpack.c.h.b16 %v231
    %v1077 = vunpack.c.l.b16 %v232
    %v1078 = vunpack.c.h.b16 %v232
    %v1079 = vunpack.c.l.b16 %v233
    %v1080 = vunpack.c.h.b16 %v233
    %v1081 = vunpack.c.l.b16 %v234
    %v1082 = vunpack.c.h.b16 %v234
    %v1083 = vunpack.c.l.b16 %v235
    %v1084 = vunpack.c.h.b16 %v235
    %v1085 = vunpack.c.l.b16 %v236
    %v1086 = vunpack.c.h.b16 %v236
    %v1087 = vunpack.c.l.b16 %v237
    %v1088 = vunpack.c.h.b16 %v237
    %v1089 = vunpack.c.l.b16 %v238
    %v1090 = vunpack.c.h.b16 %v238
    %v1091 = vunpack.c.l.b16 %v239
    %v1092 = vunpack.c.h.b16 %v239
    %v1093 = vunpack.c.l.b16 %v240
    %v1094 = vunpack.c.h.b16 %v240
    %v1095 = vunpack.c.l.b16 %v241
    %v1096 = vunpack.c.h.b16 %v241
    %v1097 = vunpack.c.l.b16 %v242
    %v1098 = vunpack.c.h.b16 %v242
    %v1099 = vunpack.c.l.b16 %v243
    %v1100 = vunpack.c.h.b16 %v243
    %v1101 = vunpack.c.l.b16 %v244
    %v1102 = vunpack.c.h.b16 %v244
    %v1103 = vunpack.c.l.b16 %v245
    %v1104 = vunpack.c.h.b16 %v245
    %v1105 = vunpack.c.l.b16 %v246
    %v1106 = vunpack.c.h.b16 %v246
    %v1107 = vunpack.c.l.b16 %v247
    %v1108 = vunpack.c.h.b16 %v247
    %v1109 = vunpack.c.l.b16 %v248
    %v1110 = vunpack.c.h.b16 %v248
    %v1111 = vunpack.c.l.b16 %v249
    %v1112 = vunpack.c.h.b16 %v249
    %v1113 = vunpack.c.l.b16 %v250
    %v1114 = vunpack.c.h.b16 %v250
    %v1115 = vunpack.c.l.b16 %v251
    %v1116 = vunpack.c.h.b16 %v251
    %v1117 = vunpack.c.l.b16 %v252
    %v1118 = vunpack.c.h.b16 %v252
    %v1119 = vunpack.c.l.b16 %v253
    %v1120 = vunpack.c.h.b16 %v253
    %v1121 = vunpack.c.l.b16 %v254
    %v1122 = vunpack.c.h.b16 %v254
    %v1123 = vunpack.c.l.b16 %v255
    %v1124 = vunpack.c.h.b16 %v255
    %v1125 = vunpack.c.l.b16 %v256
    %v1126 = vunpack.c.h.b16 %v256
    %v1127 = vunpack.c.l.b16 %v257
    %v1128 = vunpack.c.h.b16 %v257
    %v1129 = vunpack.c.l.b16 %v258
    %v1130 = vunpack.c.h.b16 %v258
    %v1131 = vunpack.c.l.b16 %v259
    %v1132 = vunpack.c.h.b16 %v259
    %v1133 = vunpack.c.l.b16 %v260
    %v1134 = vunpack.c.h.b16 %v260
    %v1135 = vunpack.c.l.b16 %v261
    %v1136 = vunpack.c.h.b16 %v261
    %v1137 = vunpack.c.l.b16 %v262
    %v1138 = vunpack.c.h.b16 %v262
    %v1139 = vunpack.c.l.b16 %v263
    %v1140 = vunpack.c.h.b16 %v263
    %v1141 = vunpack.c.l.b16 %v264
    %v1142 = vunpack.c.h.b16 %v264
    %v1143 = vunpack.c.l.b16 %v265
    %v1144 = vunpack.c.h.b16 %v265
    %v1145 = vunpack.c.l.b16 %v266
    %v1146 = vunpack.c.h.b16 %v266
    %v1147 = vunpack.c.l.b16 %v267
    %v1148 = vunpack.c.h.b16 %v267
    %v1149 = vunpack.c.l.b16 %v268
    %v1150 = vunpack.c.h.b16 %v268
    %v1151 = vunpack.c.l.b16 %v269
    %v1152 = vunpack.c.h.b16 %v269
    %v1153 = vunpack.c.l.b16 %v270
    %v1154 = vunpack.c.h.b16 %v270
    %v1155 = vunpack.c.l.b16 %v271
    %v1156 = vunpack.c.h.b16 %v271
    %v1157 = vunpack.c.l.b16 %v272
    %v1158 = vunpack.c.h.b16 %v272
    %v1159 = vunpack.c.l.b16 %v273
    %v1160 = vunpack.c.h.b16 %v273
    %v1161 = vunpack.c.l.b16 %v274
    %v1162 = vunpack.c.h.b16 %v274
    %v1163 = vunpack.c.l.b16 %v275
    %v1164 = vunpack.c.h.b16 %v275
    %v1165 = vunpack.c.l.b16 %v276
    %v1166 = vunpack.c.h.b16 %v276
    %v1167 = vunpack.c.l.b16 %v277
    %v1168 = vunpack.c.h.b16 %v277
    %v1169 = vunpack.c.l.b16 %v278
    %v1170 = vunpack.c.h.b16 %v278
    %v1171 = vunpack.c.l.b16 %v279
    %v1172 = vunpack.c.h.b16 %v279
    %v1173 = vunpack.c.l.b16 %v280
    %v1174 = vunpack.c.h.b16 %v280
    %v1175 = vunpack.c.l.b16 %v281
    %v1176 = vunpack.c.h.b16 %v281
    %v1177 = vunpack.c.l.b16 %v282
    %v1178 = vunpack.c.h.b16 %v282
    %v1179 = vunpack.c.l.b16 %v283
    %v1180 = vunpack.c.h.b16 %v283
    %v1181 = vunpack.c.l.b16 %v284
    %v1182 = vunpack.c.h.b16 %v284
    %v1183 = vunpack.c.l.b16 %v285
    %v1184 = vunpack.c.h.b16 %v285
    %v1185 = vunpack.c.l.b16 %v286
    %v1186 = vunpack.c.h.b16 %v286
    %v1187 = vunpack.c.l.b16 %v287
    %v1188 = vunpack.c.h.b16 %v287
    %v1189 = vunpack.c.l.b16 %v288
    %v1190 = vunpack.c.h.b16 %v288
    %v1191 = vunpack.c.l.b16 %v289
    %v1192 = vunpack.c.h.b16 %v289
    %v1193 = vunpack.c.l.b16 %v290
    %v1194 = vunpack.c.h.b16 %v290
    %v1195 = vunpack.c.l.b16 %v291
    %v1196 = vunpack.c.h.b16 %v291
    %v1197 = vunpack.c.l.b16 %v292
    %v1198 = vunpack.c.h.b16 %v292
    %v1199 = vunpack.c.l.b16 %v293
    %v1200 = vunpack.c.h.b16 %v293
    %v1201 = vunpack.c.l.b16 %v294
    %v1202 = vunpack.c.h.b16 %v294
    %v1203 = vunpack.c.l.b16 %v295
    %v1204 = vunpack.c.h.b16 %v295
    %v1205 = vunpack.c.l.b16 %v296
    %v1206 = vunpack.c.h.b16 %v296
    %v1207 = vunpack.c.l.b16 %v297
    %v1208 = vunpack.c.h.b16 %v297
    %v1209 = vunpack.c.l.b16 %v298
    %v1210 = vunpack.c.h.b16 %v298
    %v1211 = vunpack.c.l.b16 %v299
    %v1212 = vunpack.c.h.b16 %v299
    %v1213 = vunpack.c.l.b16 %v300
    %v1214 = vunpack.c.h.b16 %v300
    %v1215 = vunpack.c.l.b16 %v301
    %v1216 = vunpack.c.h.b16 %v301
    %v1217 = vunpack.c.l.b16 %v302
    %v1218 = vunpack.c.h.b16 %v302
    %v1219 = vunpack.c.l.b16 %v303
    %v1220 = vunpack.c.h.b16 %v303
    %v1221 = vunpack.c.l.b16 %v304
    %v1222 = vunpack.c.h.b16 %v304
    %v1223 = vunpack.c.l.b16 %v305
    %v1224 = vunpack.c.h.b16 %v305
    %v1225 = vunpack.c.l.b16 %v306
    %v1226 = vunpack.c.h.b16 %v306
    %v1227 = vunpack.c.l.b16 %v307
    %v1228 = vunpack.c.h.b16 %v307
    %v1229 = vunpack.c.l.b16 %v308
    %v1230 = vunpack.c.h.b16 %v308
    %v1231 = vunpack.c.l.b16 %v309
    %v1232 = vunpack.c.h.b16 %v309
    %v1233 = vunpack.c.l.b16 %v310
    %v1234 = vunpack.c.h.b16 %v310
    %v1235 = vunpack.c.l.b16 %v311
    %v1236 = vunpack.c.h.b16 %v311
    %v1237 = vunpack.c.l.b16 %v312
    %v1238 = vunpack.c.h.b16 %v312
    %v1239 = vunpack.c.l.b16 %v313
    %v1240 = vunpack.c.h.b16 %v313
    %v1241 = vunpack.c.l.b16 %v314
    %v1242 = vunpack.c.h.b16 %v314
    %v1243 = vunpack.c.l.b16 %v315
    %v1244 = vunpack.c.h.b16 %v315
    %v1245 = vunpack.c.l.b16 %v316
    %v1246 = vunpack.c.h.b16 %v316
    %v1247 = vunpack.c.l.b16 %v317
    %v1248 = vunpack.c.h.b16 %v317
    %v1249 = vunpack.c.l.b16 %v318
    %v1250 = vunpack.c.h.b16 %v318
    %v1251 = vunpack.c.l.b16 %v319
    %v1252 = vunpack.c.h.b16 %v319
    %v1253 = vunpack.c.l.b16 %v320
    %v1254 = vunpack.c.h.b16 %v320
    %v1255 = vunpack.c.l.b16 %v321
    %v1256 = vunpack.c.h.b16 %v321
    %v1257 = vunpack.c.l.b16 %v322
    %v1258 = vunpack.c.h.b16 %v322
    %v1259 = vunpack.c.l.b16 %v323
    %v1260 = vunpack.c.h.b16 %v323
    %v1261 = vunpack.c.l.b16 %v324
    %v1262 = vunpack.c.h.b16 %v324
    %v1263 = vunpack.c.l.b16 %v325
    %v1264 = vunpack.c.h.b16 %v325
    %v1265 = vunpack.c.l.b16 %v326
    %v1266 = vunpack.c.h.b16 %v326
    %v1267 = vunpack.c.l.b16 %v327
    %v1268 = vunpack.c.h.b16 %v327
    %v1269 = vunpack.c.l.b16 %v328
    %v1270 = vunpack.c.h.b16 %v328
    %v1271 = vunpack.c.l.b16 %v329
    %v1272 = vunpack.c.h.b16 %v329
    %v1273 = vunpack.c.l.b16 %v330
    %v1274 = vunpack.c.h.b16 %v330
    %v1275 = vunpack.c.l.b16 %v331
    %v1276 = vunpack.c.h.b16 %v331
    %v1277 = vunpack.c.l.b16 %v332
    %v1278 = vunpack.c.h.b16 %v332
    %v1279 = vunpack.c.l.b16 %v333
    %v1280 = vunpack.c.h.b16 %v333
    %v1281 = vunpack.c.l.b16 %v334
    %v1282 = vunpack.c.h.b16 %v334
    %v1283 = vunpack.c.l.b16 %v335
    %v1284 = vunpack.c.h.b16 %v335
    %v1285 = vunpack.c.l.b16 %v336
    %v1286 = vunpack.c.h.b16 %v336
    %v1287 = vunpack.c.l.b16 %v337
    %v1288 = vunpack.c.h.b16 %v337
    %v1289 = vunpack.c.l.b16 %v338
    %v1290 = vunpack.c.h.b16 %v338
    %v1291 = vunpack.c.l.b16 %v339
    %v1292 = vunpack.c.h.b16 %v339
    %v1293 = vunpack.c.l.b16 %v340
    %v1294 = vunpack.c.h.b16 %v340
    %v1295 = vunpack.c.l.b16 %v341
    %v1296 = vunpack.c.h.b16 %v341
    %v1297 = vunpack.c.l.b16 %v342
    %v1298 = vunpack.c.h.b16 %v342
    %v1299 = vunpack.c.l.b16 %v343
    %v1300 = vunpack.c.h.b16 %v343
    %v1301 = vunpack.c.l.b16 %v344
    %v1302 = vunpack.c.h.b16 %v344
    %v1303 = vunpack.c.l.b16 %v345
    %v1304 = vunpack.c.h.b16 %v345
    %v1305 = vunpack.c.l.b16 %v346
    %v1306 = vunpack.c.h.b16 %v346
    %v1307 = vunpack.c.l.b16 %v347
    %v1308 = vunpack.c.h.b16 %v347
    %v1309 = vunpack.c.l.b16 %v348
    %v1310 = vunpack.c.h.b16 %v348
    %v1311 = vunpack.c.l.b16 %v349
    %v1312 = vunpack.c.h.b16 %v349
    %v1313 = vunpack.c.l.b16 %v350
    %v1314 = vunpack.c.h.b16 %v350
    %v1315 = vunpack.c.l.b16 %v351
    %v1316 = vunpack.c.h.b16 %v351
    %v1317 = vunpack.c.l.b16 %v352
    %v1318 = vunpack.c.h.b16 %v352
    %v1319 = vunpack.c.l.b16 %v353
    %v1320 = vunpack.c.h.b16 %v353
    %v1321 = vunpack.c.l.b16 %v354
    %v1322 = vunpack.c.h.b16 %v354
    %v1323 = vunpack.c.l.b16 %v355
    %v1324 = vunpack.c.h.b16 %v355
    %v1325 = vunpack.c.l.b16 %v356
    %v1326 = vunpack.c.h.b16 %v356
    %v1327 = vunpack.c.l.b16 %v357
    %v1328 = vunpack.c.h.b16 %v357
    %v1329 = vunpack.c.l.b16 %v358
    %v1330 = vunpack.c.h.b16 %v358
    %v1331 = vunpack.c.l.b16 %v359
    %v1332 = vunpack.c.h.b16 %v359
    %v1333 = vunpack.c.l.b16 %v360
    %v1334 = vunpack.c.h.b16 %v360
    %v1335 = vunpack.c.l.b16 %v361
    %v1336 = vunpack.c.h.b16 %v361
    %v1337 = vunpack.c.l.b16 %v362
    %v1338 = vunpack.c.h.b16 %v362
    %v1339 = vunpack.c.l.b16 %v363
    %v1340 = vunpack.c.h.b16 %v363
    %v1341 = vunpack.c.l.b16 %v364
    %v1342 = vunpack.c.h.b16 %v364
    %v1343 = vunpack.c.l.b16 %v365
    %v1344 = vunpack.c.h.b16 %v365
    %v1345 = vunpack.c.l.b16 %v366
    %v1346 = vunpack.c.h.b16 %v366
    %v1347 = vunpack.c.l.b16 %v367
    %v1348 = vunpack.c.h.b16 %v367
    %v1349 = vunpack.c.l.b16 %v368
    %v1350 = vunpack.c.h.b16 %v368
    %v1351 = vunpack.c.l.b16 %v369
    %v1352 = vunpack.c.h.b16 %v369
    %v1353 = vunpack.c.l.b16 %v370
    %v1354 = vunpack.c.h.b16 %v370
    %v1355 = vunpack.c.l.b16 %v371
    %v1356 = vunpack.c.h.b16 %v371
    %v1357 = vunpack.c.l.b16 %v372
    %v1358 = vunpack.c.h.b16 %v372
    %v1359 = vunpack.c.l.b16 %v373
    %v1360 = vunpack.c.h.b16 %v373
    %v1361 = vunpack.c.l.b16 %v374
    %v1362 = vunpack.c.h.b16 %v374
    %v1363 = vunpack.c.l.b16 %v375
    %v1364 = vunpack.c.h.b16 %v375
    %v1365 = vunpack.c.l.b16 %v376
    %v1366 = vunpack.c.h.b16 %v376
    %v1367 = vunpack.c.l.b16 %v377
    %v1368 = vunpack.c.h.b16 %v377
    %v1369 = vunpack.c.l.b16 %v378
    %v1370 = vunpack.c.h.b16 %v378
    %v1371 = vunpack.c.l.b16 %v379
    %v1372 = vunpack.c.h.b16 %v379
    %v1373 = vunpack.c.l.b16 %v380
    %v1374 = vunpack.c.h.b16 %v380
    %v1375 = vunpack.c.l.b16 %v381
    %v1376 = vunpack.c.h.b16 %v381
    %v1377 = vunpack.c.l.b16 %v382
    %v1378 = vunpack.c.h.b16 %v382
    %v1379 = vunpack.c.l.b16 %v383
    %v1380 = vunpack.c.h.b16 %v383
    %v1381 = vunpack.c.l.b16 %v384
    %v1382 = vunpack.c.h.b16 %v384
    %v1383 = vunpack.c.l.b16 %v385
    %v1384 = vunpack.c.h.b16 %v385
    %v1385 = vunpack.c.l.b16 %v386
    %v1386 = vunpack.c.h.b16 %v386
    %v1387 = vunpack.c.l.b16 %v387
    %v1388 = vunpack.c.h.b16 %v387
    %v1389 = vunpack.c.l.b16 %v388
    %v1390 = vunpack.c.h.b16 %v388
    %v1391 = vunpack.c.l.b16 %v389
    %v1392 = vunpack.c.h.b16 %v389
    %v1393 = vunpack.c.l.b16 %v390
    %v1394 = vunpack.c.h.b16 %v390
    %v1395 = vunpack.c.l.b16 %v391
    %v1396 = vunpack.c.h.b16 %v391
    %v1397 = vunpack.c.l.b16 %v392
    %v1398 = vunpack.c.h.b16 %v392
    %v1399 = vunpack.c.l.b16 %v393
    %v1400 = vunpack.c.h.b16 %v393
    %v1401 = vunpack.c.l.b16 %v394
    %v1402 = vunpack.c.h.b16 %v394
    %v1403 = vunpack.c.l.b16 %v395
    %v1404 = vunpack.c.h.b16 %v395
    %v1405 = vunpack.c.l.b16 %v396
    %v1406 = vunpack.c.h.b16 %v396
    %v1407 = vunpack.c.l.b16 %v397
    %v1408 = vunpack.c.h.b16 %v397
    %v1409 = vunpack.c.l.b16 %v398
    %v1410 = vunpack.c.h.b16 %v398
    %v1411 = vunpack.c.l.b16 %v399
    %v1412 = vunpack.c.h.b16 %v399
    %v1413 = vunpack.c.l.b16 %v400
    %v1414 = vunpack.c.h.b16 %v400
    %v1415 = vunpack.c.l.b16 %v401
    %v1416 = vunpack.c.h.b16 %v401
    %v1417 = vunpack.c.l.b16 %v402
    %v1418 = vunpack.c.h.b16 %v402
    %v1419 = vunpack.c.l.b16 %v403
    %v1420 = vunpack.c.h.b16 %v403
    %v1421 = vunpack.c.l.b16 %v404
    %v1422 = vunpack.c.h.b16 %v404
    %v1423 = vunpack.c.l.b16 %v405
    %v1424 = vunpack.c.h.b16 %v405
    %v1425 = vunpack.c.l.b16 %v406
    %v1426 = vunpack.c.h.b16 %v406
    %v1427 = vunpack.c.l.b16 %v407
    %v1428 = vunpack.c.h.b16 %v407
    %v1429 = vunpack.c.l.b16 %v408
    %v1430 = vunpack.c.h.b16 %v408
    %v1431 = vunpack.c.l.b16 %v409
    %v1432 = vunpack.c.h.b16 %v409
    %v1433 = vunpack.c.l.b16 %v410
    %v1434 = vunpack.c.h.b16 %v410
    %v1435 = vunpack.c.l.b16 %v411
    %v1436 = vunpack.c.h.b16 %v411
    %v1437 = vunpack.c.l.b16 %v412
    %v1438 = vunpack.c.h.b16 %v412
    %v1439 = vunpack.c.l.b16 %v413
    %v1440 = vunpack.c.h.b16 %v413
    %v1441 = vunpack.c.l.b16 %v414
    %v1442 = vunpack.c.h.b16 %v414
    %v1443 = vunpack.c.l.b16 %v415
    %v1444 = vunpack.c.h.b16 %v415
    %v1445 = vunpack.c.l.b16 %v416
    %v1446 = vunpack.c.h.b16 %v416
    %v1447 = vunpack.c.l.b16 %v417
    %v1448 = vunpack.c.h.b16 %v417
    %v1449 = vunpack.c.l.b16 %v418
    %v1450 = vunpack.c.h.b16 %v418
    %v1451 = vunpack.c.l.b16 %v419
    %v1452 = vunpack.c.h.b16 %v419
    %v1453 = vunpack.c.l.b16 %v420
    %v1454 = vunpack.c.h.b16 %v420
    %v1455 = vunpack.c.l.b16 %v421
    %v1456 = vunpack.c.h.b16 %v421
    %v1457 = vunpack.c.l.b16 %v422
    %v1458 = vunpack.c.h.b16 %v422
    %v1459 = vunpack.c.l.b16 %v423
    %v1460 = vunpack.c.h.b16 %v423
    %v1461 = vunpack.c.l.b16 %v424
    %v1462 = vunpack.c.h.b16 %v424
    %v1463 = vunpack.c.l.b16 %v425
    %v1464 = vunpack.c.h.b16 %v425
    %v1465 = vunpack.c.l.b16 %v426
    %v1466 = vunpack.c.h.b16 %v426
    %v1467 = vunpack.c.l.b16 %v427
    %v1468 = vunpack.c.h.b16 %v427
    %v1469 = vunpack.c.l.b16 %v428
    %v1470 = vunpack.c.h.b16 %v428
    %v1471 = vunpack.c.l.b16 %v429
    %v1472 = vunpack.c.h.b16 %v429
    %v1473 = vunpack.c.l.b16 %v430
    %v1474 = vunpack.c.h.b16 %v430
    %v1475 = vunpack.c.l.b16 %v431
    %v1476 = vunpack.c.h.b16 %v431
    %v1477 = vunpack.c.l.b16 %v432
    %v1478 = vunpack.c.h.b16 %v432
    %v1479 = vunpack.c.l.b16 %v433
    %v1480 = vunpack.c.h.b16 %v433
    %v1481 = vunpack.c.l.b16 %v434
    %v1482 = vunpack.c.h.b16 %v434
    %v1483 = vunpack.c.l.b16 %v435
    %v1484 = vunpack.c.h.b16 %v435
    %v1485 = vunpack.c.l.b16 %v436
    %v1486 = vunpack.c.h.b16 %v436
    %v1487 = vunpack.c.l.b16 %v437
    %v1488 = vunpack.c.h.b16 %v437
    %v1489 = vunpack.c.l.b16 %v438
    %v1490 = vunpack.c.h.b16 %v438
    %v1491 = vunpack.c.l.b16 %v439
    %v1492 = vunpack.c.h.b16 %v439
    %v1493 = vunpack.c.l.b16 %v440
    %v1494 = vunpack.c.h.b16 %v440
    %v1495 = vunpack.c.l.b16 %v441
    %v1496 = vunpack.c.h.b16 %v441
    %v1497 = vunpack.c.l.b16 %v442
    %v1498 = vunpack.c.h.b16 %v442
    %v1499 = vunpack.c.l.b16 %v443
    %v1500 = vunpack.c.h.b16 %v443
    %v1501 = vunpack.c.l.b16 %v444
    %v1502 = vunpack.c.h.b16 %v444
    %v1503 = vunpack.c.l.b16 %v445
    %v1504 = vunpack.c.h.b16 %v445
    %v1505 = vunpack.c.l.b16 %v446
    %v1506 = vunpack.c.h.b16 %v446
    %v1507 = vunpack.c.l.b16 %v447
    %v1508 = vunpack.c.h.b16 %v447
    %v1509 = vunpack.c.l.b16 %v448
    %v1510 = vunpack.c.h.b16 %v448
    %v1511 = vunpack.c.l.b16 %v449
    %v1512 = vunpack.c.h.b16 %v449
    %v1513 = vunpack.c.l.b16 %v450
    %v1514 = vunpack.c.h.b16 %v450
    %v1515 = vunpack.c.l.b16 %v451
    %v1516 = vunpack.c.h.b16 %v451
    %v1517 = vunpack.c.l.b16 %v452
    %v1518 = vunpack.c.h.b16 %v452
    %v1519 = vunpack.c.l.b16 %v453
    %v1520 = vunpack.c.h.b16 %v453
    %v1521 = vunpack.c.l.b16 %v454
    %v1522 = vunpack.c.h.b16 %v454
    %v1523 = vunpack.c.l.b16 %v455
    %v1524 = vunpack.c.h.b16 %v455
    %v1525 = vunpack.c.l.b16 %v456
    %v1526 = vunpack.c.h.b16 %v456
    %v1527 = vunpack.c.l.b16 %v457
    %v1528 = vunpack.c.h.b16 %v457
    %v1529 = vunpack.c.l.b16 %v458
    %v1530 = vunpack.c.h.b16 %v458
    %v1531 = vunpack.c.l.b16 %v459
    %v1532 = vunpack.c.h.b16 %v459
    %v1533 = vunpack.c.l.b16 %v460
    %v1534 = vunpack.c.h.b16 %v460
    %v1535 = vunpack.c.l.b16 %v461
    %v1536 = vunpack.c.h.b16 %v461
    %v1537 = vunpack.c.l.b16 %v462
    %v1538 = vunpack.c.h.b16 %v462
    %v1539 = vunpack.c.l.b16 %v463
    %v1540 = vunpack.c.h.b16 %v463
    %v1541 = vunpack.c.l.b16 %v464
    %v1542 = vunpack.c.h.b16 %v464
    %v1543 = vunpack.c.l.b16 %v465
    %v1544 = vunpack.c.h.b16 %v465
    %v1545 = vunpack.c.l.b16 %v466
    %v1546 = vunpack.c.h.b16 %v466
    %v1547 = vunpack.c.l.b16 %v467
    %v1548 = vunpack.c.h.b16 %v467
    %v1549 = vunpack.c.l.b16 %v468
    %v1550 = vunpack.c.h.b16 %v468
    %v1551 = vunpack.c.l.b16 %v469
    %v1552 = vunpack.c.h.b16 %v469
    %v1553 = vunpack.c.l.b16 %v470
    %v1554 = vunpack.c.h.b16 %v470
    %v1555 = vunpack.c.l.b16 %v471
    %v1556 = vunpack.c.h.b16 %v471
    %v1557 = vunpack.c.l.b16 %v472
    %v1558 = vunpack.c.h.b16 %v472
    %v1559 = vunpack.c.l.b16 %v473
    %v1560 = vunpack.c.h.b16 %v473
    %v1561 = vunpack.c.l.b16 %v474
    %v1562 = vunpack.c.h.b16 %v474
    %v1563 = vunpack.c.l.b16 %v475
    %v1564 = vunpack.c.h.b16 %v475
    %v1565 = vunpack.c.l.b16 %v476
    %v1566 = vunpack.c.h.b16 %v476
    %v1567 = vunpack.c.l.b16 %v477
    %v1568 = vunpack.c.h.b16 %v477
    %v1569 = vunpack.c.l.b16 %v478
    %v1570 = vunpack.c.h.b16 %v478
    %v1571 = vunpack.c.l.b16 %v479
    %v1572 = vunpack.c.h.b16 %v479
    %v1573 = vunpack.c.l.b16 %v480
    %v1574 = vunpack.c.h.b16 %v480
    %v1575 = vunpack.c.l.b16 %v481
    %v1576 = vunpack.c.h.b16 %v481
    %v1577 = vunpack.c.l.b16 %v482
    %v1578 = vunpack.c.h.b16 %v482
    %v1579 = vunpack.c.l.b16 %v483
    %v1580 = vunpack.c.h.b16 %v483
    %v1581 = vunpack.c.l.b16 %v484
    %v1582 = vunpack.c.h.b16 %v484
    %v1583 = vunpack.c.l.b16 %v485
    %v1584 = vunpack.c.h.b16 %v485
    %v1585 = vunpack.c.l.b16 %v486
    %v1586 = vunpack.c.h.b16 %v486
    %v1587 = vunpack.c.l.b16 %v487
    %v1588 = vunpack.c.h.b16 %v487
    %v1589 = vunpack.c.l.b16 %v488
    %v1590 = vunpack.c.h.b16 %v488
    %v1591 = vunpack.c.l.b16 %v489
    %v1592 = vunpack.c.h.b16 %v489
    %v1593 = vunpack.c.l.b16 %v490
    %v1594 = vunpack.c.h.b16 %v490
    %v1595 = vunpack.c.l.b16 %v491
    %v1596 = vunpack.c.h.b16 %v491
    %v1597 = vunpack.c.l.b16 %v492
    %v1598 = vunpack.c.h.b16 %v492
    %v1599 = vunpack.c.l.b16 %v493
    %v1600 = vunpack.c.h.b16 %v493
    %v1601 = vunpack.c.l.b16 %v494
    %v1602 = vunpack.c.h.b16 %v494
    %v1603 = vunpack.c.l.b16 %v495
    %v1604 = vunpack.c.h.b16 %v495
    %v1605 = vunpack.c.l.b16 %v496
    %v1606 = vunpack.c.h.b16 %v496
    %v1607 = vunpack.c.l.b16 %v497
    %v1608 = vunpack.c.h.b16 %v497
    %v1609 = vunpack.c.l.b16 %v498
    %v1610 = vunpack.c.h.b16 %v498
    %v1611 = vunpack.c.l.b16 %v499
    %v1612 = vunpack.c.h.b16 %v499
    %v1613 = vunpack.c.l.b16 %v500
    %v1614 = vunpack.c.h.b16 %v500
    %v1615 = vunpack.c.l.b16 %v501
    %v1616 = vunpack.c.h.b16 %v501
    %v1617 = vunpack.c.l.b16 %v502
    %v1618 = vunpack.c.h.b16 %v502
    %v1619 = vpack.c.b16 %v919, %v915
    %v1620 = vpack.c.b16 %v920, %v916
    %v1621 = vpack.c.b16 %v921, %v917
    %v1622 = vpack.c.b16 %v922, %v918
    %v1623 = vpack.c.b16 %v927, %v923
    %v1624 = vpack.c.b16 %v928, %v924
    %v1625 = vpack.c.b16 %v929, %v925
    %v1626 = vpack.c.b16 %v930, %v926
    %v1627 = vpack.c.b16 %v935, %v931
    %v1628 = vpack.c.b16 %v936, %v932
    %v1629 = vpack.c.b16 %v937, %v933
    %v1630 = vpack.c.b16 %v938, %v934
    %v1631 = vpack.c.b16 %v943, %v939
    %v1632 = vpack.c.b16 %v944, %v940
    %v1633 = vpack.c.b16 %v945, %v941
    %v1634 = vpack.c.b16 %v946, %v942
    %v1635 = vpack.c.b16 %v951, %v947
    %v1636 = vpack.c.b16 %v952, %v948
    %v1637 = vpack.c.b16 %v953, %v949
    %v1638 = vpack.c.b16 %v954, %v950
    %v1639 = vpack.c.b16 %v959, %v955
    %v1640 = vpack.c.b16 %v960, %v956
    %v1641 = vpack.c.b16 %v961, %v957
    %v1642 = vpack.c.b16 %v962, %v958
    %v1643 = vpack.c.b16 %v967, %v963
    %v1644 = vpack.c.b16 %v968, %v964
    %v1645 = vpack.c.b16 %v969, %v965
    %v1646 = vpack.c.b16 %v970, %v966
    %v1647 = vpack.c.b16 %v975, %v971
    %v1648 = vpack.c.b16 %v976, %v972
    %v1649 = vpack.c.b16 %v977, %v973
    %v1650 = vpack.c.b16 %v978, %v974
    %v1651 = vpack.c.b16 %v983, %v979
    %v1652 = vpack.c.b16 %v984, %v980
    %v1653 = vpack.c.b16 %v985, %v981
    %v1654 = vpack.c.b16 %v986, %v982
    %v1655 = vpack.c.b16 %v991, %v987
    %v1656 = vpack.c.b16 %v992, %v988
    %v1657 = vpack.c.b16 %v993, %v989
    %v1658 = vpack.c.b16 %v994, %v990
    %v1659 = vpack.c.b16 %v999, %v995
    %v1660 = vpack.c.b16 %v1000, %v996
    %v1661 = vpack.c.b16 %v1001, %v997
    %v1662 = vpack.c.b16 %v1002, %v998
    %v1663 = vpack.c.b16 %v1007, %v1003
    %v1664 = vpack.c.b16 %v1008, %v1004
    %v1665 = vpack.c.b16 %v1009, %v1005
    %v1666 = vpack.c.b16 %v1010, %v1006
    %v1667 = vpack.c.b16 %v1015, %v1011
    %v1668 = vpack.c.b16 %v1016, %v1012
    %v1669 = vpack.c.b16 %v1017, %v1013
    %v1670 = vpack.c.b16 %v1018, %v1014
    %v1671 = vpack.c.b16 %v1023, %v1019
    %v1672 = vpack.c.b16 %v1024, %v1020
    %v1673 = vpack.c.b16 %v1025, %v1021
    %v1674 = vpack.c.b16 %v1026, %v1022
    %v1675 = vpack.c.b16 %v1031, %v1027
    %v1676 = vpack.c.b16 %v1032, %v1028
    %v1677 = vpack.c.b16 %v1033, %v1029
    %v1678 = vpack.c.b16 %v1034, %v1030
    %v1679 = vpack.c.b16 %v1039, %v1035
    %v1680 = vpack.c.b16 %v1040, %v1036
    %v1681 = vpack.c.b16 %v1041, %v1037
    %v1682 = vpack.c.b16 %v1042, %v1038
    %v1683 = vpack.c.b16 %v1047, %v1043
    %v1684 = vpack.c.b16 %v1048, %v1044
    %v1685 = vpack.c.b16 %v1049, %v1045
    %v1686 = vpack.c.b16 %v1050, %v1046
    %v1687 = vpack.c.b16 %v1055, %v1051
    %v1688 = vpack.c.b16 %v1056, %v1052
    %v1689 = vpack.c.b16 %v1057, %v1053
    %v1690 = vpack.c.b16 %v1058, %v1054
    %v1691 = vpack.c.b16 %v1063, %v1059
    %v1692 = vpack.c.b16 %v1064, %v1060
    %v1693 = vpack.c.b16 %v1065, %v1061
    %v1694 = vpack.c.b16 %v1066, %v1062
    %v1695 = vpack.c.b16 %v1071, %v1067
    %v1696 = vpack.c.b16 %v1072, %v1068
    %v1697 = vpack.c.b16 %v1073, %v1069
    %v1698 = vpack.c.b16 %v1074, %v1070
    %v1699 = vpack.c.b16 %v1079, %v1075
    %v1700 = vpack.c.b16 %v1080, %v1076
    %v1701 = vpack.c.b16 %v1081, %v1077
    %v1702 = vpack.c.b16 %v1082, %v1078
    %v1703 = vpack.c.b16 %v1087, %v1083
    %v1704 = vpack.c.b16 %v1088, %v1084
    %v1705 = vpack.c.b16 %v1089, %v1085
    %v1706 = vpack.c.b16 %v1090, %v1086
    %v1707 = vpack.c.b16 %v1095, %v1091
    %v1708 = vpack.c.b16 %v1096, %v1092
    %v1709 = vpack.c.b16 %v1097, %v1093
    %v1710 = vpack.c.b16 %v1098, %v1094
    %v1711 = vpack.c.b16 %v1103, %v1099
    %v1712 = vpack.c.b16 %v1104, %v1100
    %v1713 = vpack.c.b16 %v1105, %v1101
    %v1714 = vpack.c.b16 %v1106, %v1102
    %v1715 = vpack.c.b16 %v1111, %v1107
    %v1716 = vpack.c.b16 %v1112, %v1108
    %v1717 = vpack.c.b16 %v1113, %v1109
    %v1718 = vpack.c.b16 %v1114, %v1110
    %v1719 = vpack.c.b16 %v1119, %v1115
    %v1720 = vpack.c.b16 %v1120, %v1116
    %v1721 = vpack.c.b16 %v1121, %v1117
    %v1722 = vpack.c.b16 %v1122, %v1118
    %v1723 = vpack.c.b16 %v1127, %v1123
    %v1724 = vpack.c.b16 %v1128, %v1124
    %v1725 = vpack.c.b16 %v1129, %v1125
    %v1726 = vpack.c.b16 %v1130, %v1126
    %v1727 = vpack.c.b16 %v1135, %v1131
    %v1728 = vpack.c.b16 %v1136, %v1132
    %v1729 = vpack.c.b16 %v1137, %v1133
    %v1730 = vpack.c.b16 %v1138, %v1134
    %v1731 = vpack.c.b16 %v1143, %v1139
    %v1732 = vpack.c.b16 %v1144, %v1140
    %v1733 = vpack.c.b16 %v1145, %v1141
    %v1734 = vpack.c.b16 %v1146, %v1142
    %v1735 = vpack.c.b16 %v1151, %v1147
    %v1736 = vpack.c.b16 %v1152, %v1148
    %v1737 = vpack.c.b16 %v1153, %v1149
    %v1738 = vpack.c.b16 %v1154, %v1150
    %v1739 = vpack.c.b16 %v1159, %v1155
    %v1740 = vpack.c.b16 %v1160, %v1156
    %v1741 = vpack.c.b16 %v1161, %v1157
    %v1742 = vpack.c.b16 %v1162, %v1158
    %v1743 = vpack.c.b16 %v1167, %v1163
    %v1744 = vpack.c.b16 %v1168, %v1164
    %v1745 = vpack.c.b16 %v1169, %v1165
    %v1746 = vpack.c.b16 %v1170, %v1166
    %v1747 = vpack.c.b16 %v1175, %v1171
    %v1748 = vpack.c.b16 %v1176, %v1172
    %v1749 = vpack.c.b16 %v1177, %v1173
    %v1750 = vpack.c.b16 %v1178, %v1174
    %v1751 = vpack.c.b16 %v1183, %v1179
    %v1752 = vpack.c.b16 %v1184, %v1180
    %v1753 = vpack.c.b16 %v1185, %v1181
    %v1754 = vpack.c.b16 %v1186, %v1182
    %v1755 = vpack.c.b16 %v1191, %v1187
    %v1756 = vpack.c.b16 %v1192, %v1188
    %v1757 = vpack.c.b16 %v1193, %v1189
    %v1758 = vpack.c.b16 %v1194, %v1190
    %v1759 = vpack.c.b16 %v1199, %v1195
    %v1760 = vpack.c.b16 %v1200, %v1196
    %v1761 = vpack.c.b16 %v1201, %v1197
    %v1762 = vpack.c.b16 %v1202, %v1198
    %v1763 = vpack.c.b16 %v1207, %v1203
    %v1764 = vpack.c.b16 %v1208, %v1204
    %v1765 = vpack.c.b16 %v1209, %v1205
    %v1766 = vpack.c.b16 %v1210, %v1206
    %v1767 = vpack.c.b16 %v1215, %v1211
    %v1768 = vpack.c.b16 %v1216, %v1212
    %v1769 = vpack.c.b16 %v1217, %v1213
    %v1770 = vpack.c.b16 %v1218, %v1214
    %v1771 = vpack.c.b16 %v1223, %v1219
    %v1772 = vpack.c.b16 %v1224, %v1220
    %v1773 = vpack.c.b16 %v1225, %v1221
    %v1774 = vpack.c.b16 %v1226, %v1222
    %v1775 = vpack.c.b16 %v1231, %v1227
    %v1776 = vpack.c.b16 %v1232, %v1228
    %v1777 = vpack.c.b16 %v1233, %v1229
    %v1778 = vpack.c.b16 %v1234, %v1230
    %v1779 = vpack.c.b16 %v1239, %v1235
    %v1780 = vpack.c.b16 %v1240, %v1236
    %v1781 = vpack.c.b16 %v1241, %v1237
    %v1782 = vpack.c.b16 %v1242, %v1238
    %v1783 = vpack.c.b16 %v1247, %v1243
    %v1784 = vpack.c.b16 %v1248, %v1244
    %v1785 = vpack.c.b16 %v1249, %v1245
    %v1786 = vpack.c.b16 %v1250, %v1246
    %v1787 = vpack.c.b16 %v1255, %v1251
    %v1788 = vpack.c.b16 %v1256, %v1252
    %v1789 = vpack.c.b16 %v1257, %v1253
    %v1790 = vpack.c.b16 %v1258, %v1254
    %v1791 = vpack.c.b16 %v1263, %v1259
    %v1792 = vpack.c.b16 %v1264, %v1260
    %v1793 = vpack.c.b16 %v1265, %v1261
    %v1794 = vpack.c.b16 %v1266, %v1262
    %v1795 = vpack.c.b16 %v1271, %v1267
    %v1796 = vpack.c.b16 %v1272, %v1268
    %v1797 = vpack.c.b16 %v1273, %v1269
    %v1798 = vpack.c.b16 %v1274, %v1270
    %v1799 = vpack.c.b16 %v1279, %v1275
    %v1800 = vpack.c.b16 %v1280, %v1276
    %v1801 = vpack.c.b16 %v1281, %v1277
    %v1802 = vpack.c.b16 %v1282, %v1278
    %v1803 = vpack.c.b16 %v1287, %v1283
    %v1804 = vpack.c.b16 %v1288, %v1284
    %v1805 = vpack.c.b16 %v1289, %v1285
    %v1806 = vpack.c.b16 %v1290, %v1286
    %v1807 = vpack.c.b16 %v1295, %v1291
    %v1808 = vpack.c.b16 %v1296, %v1292
    %v1809 = vpack.c.b16 %v1297, %v1293
    %v1810 = vpack.c.b16 %v1298, %v1294
    %v1811 = vpack.c.b16 %v1303, %v1299
    %v1812 = vpack.c.b16 %v1304, %v1300
    %v1813 = vpack.c.b16 %v1305, %v1301
    %v1814 = vpack.c.b16 %v1306, %v1302
    %v1815 = vpack.c.b16 %v1311, %v1307
    %v1816 = vpack.c.b16 %v1312, %v1308
    %v1817 = vpack.c.b16 %v1313, %v1309
    %v1818 = vpack.c.b16 %v1314, %v1310
    %v1819 = vpack.c.b16 %v1319, %v1315
    %v1820 = vpack.c.b16 %v1320, %v1316
    %v1821 = vpack.c.b16 %v1321, %v1317
    %v1822 = vpack.c.b16 %v1322, %v1318
    %v1823 = vpack.c.b16 %v1327, %v1323
    %v1824 = vpack.c.b16 %v1328, %v1324
    %v1825 = vpack.c.b16 %v1329, %v1325
    %v1826 = vpack.c.b16 %v1330, %v1326
    %v1827 = vpack.c.b16 %v1335, %v1331
    %v1828 = vpack.c.b16 %v1336, %v1332
    %v1829 = vpack.c.b16 %v1337, %v1333
    %v1830 = vpack.c.b16 %v1338, %v1334
    %v1831 = vpack.c.b16 %v1343, %v1339
    %v1832 = vpack.c.b16 %v1344, %v1340
    %v1833 = vpack.c.b16 %v1345, %v1341
    %v1834 = vpack.c.b16 %v1346, %v1342
    %v1835 = vpack.c.b16 %v1351, %v1347
    %v1836 = vpack.c.b16 %v1352, %v1348
    %v1837 = vpack.c.b16 %v1353, %v1349
    %v1838 = vpack.c.b16 %v1354, %v1350
    %v1839 = vpack.c.b16 %v1359, %v1355
    %v1840 = vpack.c.b16 %v1360, %v1356
    %v1841 = vpack.c.b16 %v1361, %v1357
    %v1842 = vpack.c.b16 %v1362, %v1358
    %v1843 = vpack.c.b16 %v1367, %v1363
    %v1844 = vpack.c.b16 %v1368, %v1364
    %v1845 = vpack.c.b16 %v1369, %v1365
    %v1846 = vpack.c.b16 %v1370, %v1366
    %v1847 = vpack.c.b16 %v1375, %v1371
    %v1848 = vpack.c.b16 %v1376, %v1372
    %v1849 = vpack.c.b16 %v1377, %v1373
    %v1850 = vpack.c.b16 %v1378, %v1374
    %v1851 = vpack.c.b16 %v1383, %v1379
    %v1852 = vpack.c.b16 %v1384, %v1380
    %v1853 = vpack.c.b16 %v1385, %v1381
    %v1854 = vpack.c.b16 %v1386, %v1382
    %v1855 = vpack.c.b16 %v1391, %v1387
    %v1856 = vpack.c.b16 %v1392, %v1388
    %v1857 = vpack.c.b16 %v1393, %v1389
    %v1858 = vpack.c.b16 %v1394, %v1390
    %v1859 = vpack.c.b16 %v1399, %v1395
    %v1860 = vpack.c.b16 %v1400, %v1396
    %v1861 = vpack.c.b16 %v1401, %v1397
    %v1862 = vpack.c.b16 %v1402, %v1398
    %v1863 = vpack.c.b16 %v1407, %v1403
    %v1864 = vpack.c.b16 %v1408, %v1404
    %v1865 = vpack.c.b16 %v1409, %v1405
    %v1866 = vpack.c.b16 %v1410, %v1406
    %v1867 = vpack.c.b16 %v1415, %v1411
    %v1868 = vpack.c.b16 %v1416, %v1412
    %v1869 = vpack.c.b16 %v1417, %v1413
    %v1870 = vpack.c.b16 %v1418, %v1414
    %v1871 = vpack.c.b16 %v1423, %v1419
    %v1872 = vpack.c.b16 %v1424, %v1420
    %v1873 = vpack.c.b16 %v1425, %v1421
    %v1874 = vpack.c.b16 %v1426, %v1422
    %v1875 = vpack.c.b16 %v1431, %v1427
    %v1876 = vpack.c.b16 %v1432, %v1428
    %v1877 = vpack.c.b16 %v1433, %v1429
    %v1878 = vpack.c.b16 %v1434, %v1430
    %v1879 = vpack.c.b16 %v1439, %v1435
    %v1880 = vpack.c.b16 %v1440, %v1436
    %v1881 = vpack.c.b16 %v1441, %v1437
    %v1882 = vpack.c.b16 %v1442, %v1438
    %v1883 = vpack.c.b16 %v1447, %v1443
    %v1884 = vpack.c.b16 %v1448, %v1444
    %v1885 = vpack.c.b16 %v1449, %v1445
    %v1886 = vpack.c.b16 %v1450, %v1446
    %v1887 = vpack.c.b16 %v1455, %v1451
    %v1888 = vpack.c.b16 %v1456, %v1452
    %v1889 = vpack.c.b16 %v1457, %v1453
    %v1890 = vpack.c.b16 %v1458, %v1454
    %v1891 = vpack.c.b16 %v1463, %v1459
    %v1892 = vpack.c.b16 %v1464, %v1460
    %v1893 = vpack.c.b16 %v1465, %v1461
    %v1894 = vpack.c.b16 %v1466, %v1462
    %v1895 = vpack.c.b16 %v1471, %v1467
    %v1896 = vpack.c.b16 %v1472, %v1468
    %v1897 = vpack.c.b16 %v1473, %v1469
    %v1898 = vpack.c.b16 %v1474, %v1470
    %v1899 = vpack.c.b16 %v1479, %v1475
    %v1900 = vpack.c.b16 %v1480, %v1476
    %v1901 = vpack.c.b16 %v1481, %v1477
    %v1902 = vpack.c.b16 %v1482, %v1478
    %v1903 = vpack.c.b16 %v1487, %v1483
    %v1904 = vpack.c.b16 %v1488, %v1484
    %v1905 = vpack.c.b16 %v1489, %v1485
    %v1906 = vpack.c.b16 %v1490, %v1486
    %v1907 = vpack.c.b16 %v1495, %v1491
    %v1908 = vpack.c.b16 %v1496, %v1492
    %v1909 = vpack.c.b16 %v1497, %v1493
    %v1910 = vpack.c.b16 %v1498, %v1494
    %v1911 = vpack.c.b16 %v1503, %v1499
    %v1912 = vpack.c.b16 %v1504, %v1500
    %v1913 = vpack.c.b16 %v1505, %v1501
    %v1914 = vpack.c.b16 %v1506, %v1502
    %v1915 = vpack.c.b16 %v1511, %v1507
    %v1916 = vpack.c.b16 %v1512, %v1508
    %v1917 = vpack.c.b16 %v1513, %v1509
    %v1918 = vpack.c.b16 %v1514, %v1510
    %v1919 = vpack.c.b16 %v1519, %v1515
    %v1920 = vpack.c.b16 %v1520, %v1516
    %v1921 = vpack.c.b16 %v1521, %v1517
    %v1922 = vpack.c.b16 %v1522, %v1518
    %v1923 = vpack.c.b16 %v1527, %v1523
    %v1924 = vpack.c.b16 %v1528, %v1524
    %v1925 = vpack.c.b16 %v1529, %v1525
    %v1926 = vpack.c.b16 %v1530, %v1526
    %v1927 = vpack.c.b16 %v1535, %v1531
    %v1928 = vpack.c.b16 %v1536, %v1532
    %v1929 = vpack.c.b16 %v1537, %v1533
    %v1930 = vpack.c.b16 %v1538, %v1534
    %v1931 = vpack.c.b16 %v1543, %v1539
    %v1932 = vpack.c.b16 %v1544, %v1540
    %v1933 = vpack.c.b16 %v1545, %v1541
    %v1934 = vpack.c.b16 %v1546, %v1542
    %v1935 = vpack.c.b16 %v1551, %v1547
    %v1936 = vpack.c.b16 %v1552, %v1548
    %v1937 = vpack.c.b16 %v1553, %v1549
    %v1938 = vpack.c.b16 %v1554, %v1550
    %v1939 = vpack.c.b16 %v1559, %v1555
    %v1940 = vpack.c.b16 %v1560, %v1556
    %v1941 = vpack.c.b16 %v1561, %v1557
    %v1942 = vpack.c.b16 %v1562, %v1558
    %v1943 = vpack.c.b16 %v1567, %v1563
    %v1944 = vpack.c.b16 %v1568, %v1564
    %v1945 = vpack.c.b16 %v1569, %v1565
    %v1946 = vpack.c.b16 %v1570, %v1566
    %v1947 = vpack.c.b16 %v1575, %v1571
    %v1948 = vpack.c.b16 %v1576, %v1572
    %v1949 = vpack.c.b16 %v1577, %v1573
    %v1950 = vpack.c.b16 %v1578, %v1574
    %v1951 = vpack.c.b16 %v1583, %v1579
    %v1952 = vpack.c.b16 %v1584, %v1580
    %v1953 = vpack.c.b16 %v1585, %v1581
    %v1954 = vpack.c.b16 %v1586, %v1582
    %v1955 = vpack.c.b16 %v1591, %v1587
    %v1956 = vpack.c.b16 %v1592, %v1588
    %v1957 = vpack.c.b16 %v1593, %v1589
    %v1958 = vpack.c.b16 %v1594, %v1590
    %v1959 = vpack.c.b16 %v1599, %v1595
    %v1960 = vpack.c.b16 %v1600, %v1596
    %v1961 = vpack.c.b16 %v1601, %v1597
    %v1962 = vpack.c.b16 %v1602, %v1598
    %v1963 = vpack.c.b16 %v1607, %v1603
    %v1964 = vpack.c.b16 %v1608, %v1604
    %v1965 = vpack.c.b16 %v1609, %v1605
    %v1966 = vpack.c.b16 %v1610, %v1606
    %v1967 = vpack.c.b16 %v1615, %v1611
    %v1968 = vpack.c.b16 %v1616, %v1612
    %v1969 = vpack.c.b16 %v1617, %v1613
    %v1970 = vpack.c.b16 %v1618, %v1614
    %vm2319 = vcmask 1014784
    %v2321 = vsel %vm2319, %v552, 0
    %vm2323 = vcmask 1045504
    %v2325 = vsel %vm2323, %v1967, 0
    %v2328 = vsel %vm2323, %v1968, 0
    %v2331 = vsel %vm2323, %v1969, 0
    %v2334 = vsel %vm2323, %v1970, 0
    %2336 = vmatprep.subr.bf16.mxu0 %v1620
    %2337 = vmatpush1.bf16.msra.mxu0 %v1619
    %2338 = vmatprep.subr.bf16.mxu0 %v1624
    %2339 = vmatpush1.bf16.msra.mxu0 %v1623
    %2340 = vmatprep.subr.bf16.mxu0 %v1628
    %2341 = vmatpush1.bf16.msra.mxu0 %v1627
    %2342 = vmatprep.subr.bf16.mxu0 %v1632
    %2343 = vmatpush1.bf16.msra.mxu0 %v1631
    %2344 = vmatprep.subr.bf16.mxu0 %v1636
    %2345 = vmatpush1.bf16.msra.mxu0 %v1635
    %2346 = vmatprep.subr.bf16.mxu0 %v1640
    %2347 = vmatpush1.bf16.msra.mxu0 %v1639
    %2348 = vmatprep.subr.bf16.mxu0 %v1644
    %2349 = vmatpush1.bf16.msra.mxu0 %v1643
    %2350 = vmatprep.subr.bf16.mxu0 %v1648
    %2351 = vmatpush1.bf16.msra.mxu0 %v1647
    %2352 = vmatprep.subr.bf16.mxu0 %v1652
    %2353 = vmatpush1.bf16.msra.mxu0 %v1651
    %2354 = vmatprep.subr.bf16.mxu0 %v1656
    %2355 = vmatpush1.bf16.msra.mxu0 %v1655
    %2356 = vmatprep.subr.bf16.mxu0 %v1660
    %2357 = vmatpush1.bf16.msra.mxu0 %v1659
    %2358 = vmatprep.subr.bf16.mxu0 %v1664
    %2359 = vmatpush1.bf16.msra.mxu0 %v1663
    %2360 = vmatprep.subr.bf16.mxu0 %v1668
    %2361 = vmatpush1.bf16.msra.mxu0 %v1667
    %2362 = vmatprep.subr.bf16.mxu0 %v1672
    %2363 = vmatpush1.bf16.msra.mxu0 %v1671
    %2364 = vmatprep.subr.bf16.mxu0 %v1676
    %2365 = vmatpush1.bf16.msra.mxu0 %v1675
    %2366 = vmatprep.subr.bf16.mxu0 %v1680
    %2367 = vmatpush1.bf16.msra.mxu0 %v1679
    %2368 = vmatprep.mubr.bf16.mxu0 %v543
    %2369 = vmatmul.mubr.bf16.gmra.mrb[0].mxu0 %v542
    %v2370 = vpop.f32.mrb[0].mxu0
    %v2371 = vadd.f32 %v508, %v2370
    %v2372 = vpop.f32.mrb[0].mxu0
    %v2373 = vadd.f32 %v512, %v2372
    %v2374 = vpop.f32.mrb[0].mxu0
    %v2375 = vpop.f32.mrb[0].mxu0
    %2376 = vdwg.mxu0
    %2377 = vmatprep.subr.bf16.mxu0 %v1684
    %2378 = vmatpush1.bf16.msra.mxu0 %v1683
    %2379 = vmatprep.subr.bf16.mxu0 %v1688
    %2380 = vmatpush1.bf16.msra.mxu0 %v1687
    %2381 = vmatprep.subr.bf16.mxu0 %v1692
    %2382 = vmatpush1.bf16.msra.mxu0 %v1691
    %2383 = vmatprep.subr.bf16.mxu0 %v1696
    %2384 = vmatpush1.bf16.msra.mxu0 %v1695
    %2385 = vmatprep.subr.bf16.mxu0 %v1700
    %2386 = vmatpush1.bf16.msra.mxu0 %v1699
    %2387 = vmatprep.subr.bf16.mxu0 %v1704
    %2388 = vmatpush1.bf16.msra.mxu0 %v1703
    %2389 = vmatprep.subr.bf16.mxu0 %v1708
    %2390 = vmatpush1.bf16.msra.mxu0 %v1707
    %2391 = vmatprep.subr.bf16.mxu0 %v1712
    %2392 = vmatpush1.bf16.msra.mxu0 %v1711
    %2393 = vmatprep.subr.bf16.mxu0 %v1716
    %2394 = vmatpush1.bf16.msra.mxu0 %v1715
    %2395 = vmatprep.subr.bf16.mxu0 %v1720
    %2396 = vmatpush1.bf16.msra.mxu0 %v1719
    %2397 = vmatprep.subr.bf16.mxu0 %v1724
    %2398 = vmatpush1.bf16.msra.mxu0 %v1723
    %2399 = vmatprep.subr.bf16.mxu0 %v1728
    %2400 = vmatpush1.bf16.msra.mxu0 %v1727
    %2401 = vmatprep.subr.bf16.mxu0 %v1732
    %2402 = vmatpush1.bf16.msra.mxu0 %v1731
    %2403 = vmatprep.subr.bf16.mxu0 %v1736
    %2404 = vmatpush1.bf16.msra.mxu0 %v1735
    %2405 = vmatprep.subr.bf16.mxu0 %v1740
    %2406 = vmatpush1.bf16.msra.mxu0 %v1739
    %2407 = vmatprep.subr.bf16.mxu0 %v1744
    %2408 = vmatpush1.bf16.msra.mxu0 %v1743
    %2409 = vmatprep.mubr.bf16.mxu0 %v545
    %2410 = vmatmul.mubr.bf16.gmra.mrb[0].mxu0 %v544
    %v2411 = vpop.f32.mrb[0].mxu0
    %v2412 = vadd.f32 %v2371, %v2411
    %v2413 = vpop.f32.mrb[0].mxu0
    %v2414 = vadd.f32 %v2373, %v2413
    %v2415 = vpop.f32.mrb[0].mxu0
    %v2416 = vpop.f32.mrb[0].mxu0
    %2417 = vdwg.mxu0
    %2418 = vmatprep.subr.bf16.mxu0 %v1748
    %2419 = vmatpush1.bf16.msra.mxu0 %v1747
    %2420 = vmatprep.subr.bf16.mxu0 %v1752
    %2421 = vmatpush1.bf16.msra.mxu0 %v1751
    %2422 = vmatprep.subr.bf16.mxu0 %v1756
    %2423 = vmatpush1.bf16.msra.mxu0 %v1755
    %2424 = vmatprep.subr.bf16.mxu0 %v1760
    %2425 = vmatpush1.bf16.msra.mxu0 %v1759
    %2426 = vmatprep.subr.bf16.mxu0 %v1764
    %2427 = vmatpush1.bf16.msra.mxu0 %v1763
    %2428 = vmatprep.subr.bf16.mxu0 %v1768
    %2429 = vmatpush1.bf16.msra.mxu0 %v1767
    %2430 = vmatprep.subr.bf16.mxu0 %v1772
    %2431 = vmatpush1.bf16.msra.mxu0 %v1771
    %2432 = vmatprep.subr.bf16.mxu0 %v1776
    %2433 = vmatpush1.bf16.msra.mxu0 %v1775
    %2434 = vmatprep.subr.bf16.mxu0 %v1780
    %2435 = vmatpush1.bf16.msra.mxu0 %v1779
    %2436 = vmatprep.subr.bf16.mxu0 %v1784
    %2437 = vmatpush1.bf16.msra.mxu0 %v1783
    %2438 = vmatprep.subr.bf16.mxu0 %v1788
    %2439 = vmatpush1.bf16.msra.mxu0 %v1787
    %2440 = vmatprep.subr.bf16.mxu0 %v1792
    %2441 = vmatpush1.bf16.msra.mxu0 %v1791
    %2442 = vmatprep.subr.bf16.mxu0 %v1796
    %2443 = vmatpush1.bf16.msra.mxu0 %v1795
    %2444 = vmatprep.subr.bf16.mxu0 %v1800
    %2445 = vmatpush1.bf16.msra.mxu0 %v1799
    %2446 = vmatprep.subr.bf16.mxu0 %v1804
    %2447 = vmatpush1.bf16.msra.mxu0 %v1803
    %2448 = vmatprep.subr.bf16.mxu0 %v1808
    %2449 = vmatpush1.bf16.msra.mxu0 %v1807
    %2450 = vmatprep.mubr.bf16.mxu0 %v547
    %2451 = vmatmul.mubr.bf16.gmra.mrb[0].mxu0 %v546
    %v2452 = vpop.f32.mrb[0].mxu0
    %v2453 = vadd.f32 %v2412, %v2452
    %v2454 = vpop.f32.mrb[0].mxu0
    %v2455 = vadd.f32 %v2414, %v2454
    %v2456 = vpop.f32.mrb[0].mxu0
    %v2457 = vpop.f32.mrb[0].mxu0
    %2458 = vdwg.mxu0
    %2459 = vmatprep.subr.bf16.mxu0 %v1812
    %2460 = vmatpush1.bf16.msra.mxu0 %v1811
    %2461 = vmatprep.subr.bf16.mxu0 %v1816
    %2462 = vmatpush1.bf16.msra.mxu0 %v1815
    %2463 = vmatprep.subr.bf16.mxu0 %v1820
    %2464 = vmatpush1.bf16.msra.mxu0 %v1819
    %2465 = vmatprep.subr.bf16.mxu0 %v1824
    %2466 = vmatpush1.bf16.msra.mxu0 %v1823
    %2467 = vmatprep.subr.bf16.mxu0 %v1828
    %2468 = vmatpush1.bf16.msra.mxu0 %v1827
    %2469 = vmatprep.subr.bf16.mxu0 %v1832
    %2470 = vmatpush1.bf16.msra.mxu0 %v1831
    %2471 = vmatprep.subr.bf16.mxu0 %v1836
    %2472 = vmatpush1.bf16.msra.mxu0 %v1835
    %2473 = vmatprep.subr.bf16.mxu0 %v1840
    %2474 = vmatpush1.bf16.msra.mxu0 %v1839
    %2475 = vmatprep.subr.bf16.mxu0 %v1844
    %2476 = vmatpush1.bf16.msra.mxu0 %v1843
    %2477 = vmatprep.subr.bf16.mxu0 %v1848
    %2478 = vmatpush1.bf16.msra.mxu0 %v1847
    %2479 = vmatprep.subr.bf16.mxu0 %v1852
    %2480 = vmatpush1.bf16.msra.mxu0 %v1851
    %2481 = vmatprep.subr.bf16.mxu0 %v1856
    %2482 = vmatpush1.bf16.msra.mxu0 %v1855
    %2483 = vmatprep.subr.bf16.mxu0 %v1860
    %2484 = vmatpush1.bf16.msra.mxu0 %v1859
    %2485 = vmatprep.subr.bf16.mxu0 %v1864
    %2486 = vmatpush1.bf16.msra.mxu0 %v1863
    %2487 = vmatprep.subr.bf16.mxu0 %v1868
    %2488 = vmatpush1.bf16.msra.mxu0 %v1867
    %2489 = vmatprep.subr.bf16.mxu0 %v1872
    %2490 = vmatpush1.bf16.msra.mxu0 %v1871
    %2491 = vmatprep.mubr.bf16.mxu0 %v549
    %2492 = vmatmul.mubr.bf16.gmra.mrb[0].mxu0 %v548
    %v2493 = vpop.f32.mrb[0].mxu0
    %v2494 = vadd.f32 %v2453, %v2493
    %v2495 = vpop.f32.mrb[0].mxu0
    %v2496 = vadd.f32 %v2455, %v2495
    %v2497 = vpop.f32.mrb[0].mxu0
    %v2498 = vpop.f32.mrb[0].mxu0
    %2499 = vdwg.mxu0
    %2500 = vmatprep.subr.bf16.mxu0 %v1876
    %2501 = vmatpush1.bf16.msra.mxu0 %v1875
    %2502 = vmatprep.subr.bf16.mxu0 %v1880
    %2503 = vmatpush1.bf16.msra.mxu0 %v1879
    %2504 = vmatprep.subr.bf16.mxu0 %v1884
    %2505 = vmatpush1.bf16.msra.mxu0 %v1883
    %2506 = vmatprep.subr.bf16.mxu0 %v1888
    %2507 = vmatpush1.bf16.msra.mxu0 %v1887
    %2508 = vmatprep.subr.bf16.mxu0 %v1892
    %2509 = vmatpush1.bf16.msra.mxu0 %v1891
    %2510 = vmatprep.subr.bf16.mxu0 %v1896
    %2511 = vmatpush1.bf16.msra.mxu0 %v1895
    %2512 = vmatprep.subr.bf16.mxu0 %v1900
    %2513 = vmatpush1.bf16.msra.mxu0 %v1899
    %2514 = vmatprep.subr.bf16.mxu0 %v1904
    %2515 = vmatpush1.bf16.msra.mxu0 %v1903
    %2516 = vmatprep.subr.bf16.mxu0 %v1908
    %2517 = vmatpush1.bf16.msra.mxu0 %v1907
    %2518 = vmatprep.subr.bf16.mxu0 %v1912
    %2519 = vmatpush1.bf16.msra.mxu0 %v1911
    %2520 = vmatprep.subr.bf16.mxu0 %v1916
    %2521 = vmatpush1.bf16.msra.mxu0 %v1915
    %2522 = vmatprep.subr.bf16.mxu0 %v1920
    %2523 = vmatpush1.bf16.msra.mxu0 %v1919
    %2524 = vmatprep.subr.bf16.mxu0 %v1924
    %2525 = vmatpush1.bf16.msra.mxu0 %v1923
    %2526 = vmatprep.subr.bf16.mxu0 %v1928
    %2527 = vmatpush1.bf16.msra.mxu0 %v1927
    %2528 = vmatprep.subr.bf16.mxu0 %v1932
    %2529 = vmatpush1.bf16.msra.mxu0 %v1931
    %2530 = vmatprep.subr.bf16.mxu0 %v1936
    %2531 = vmatpush1.bf16.msra.mxu0 %v1935
    %2532 = vmatprep.mubr.bf16.mxu0 %v551
    %2533 = vmatmul.mubr.bf16.gmra.mrb[0].mxu0 %v550
    %v2534 = vpop.f32.mrb[0].mxu0
    %v2535 = vadd.f32 %v2494, %v2534
    %v2536 = vpop.f32.mrb[0].mxu0
    %v2537 = vadd.f32 %v2496, %v2536
    %v2538 = vpop.f32.mrb[0].mxu0
    %v2539 = vpop.f32.mrb[0].mxu0
    %2540 = vdwg.mxu0
    %2541 = vmatprep.subr.bf16.mxu0 %v1940
    %2542 = vmatpush1.bf16.msra.mxu0 %v1939
    %2543 = vmatprep.subr.bf16.mxu0 %v1944
    %2544 = vmatpush1.bf16.msra.mxu0 %v1943
    %2545 = vmatprep.subr.bf16.mxu0 %v1948
    %2546 = vmatpush1.bf16.msra.mxu0 %v1947
    %2547 = vmatprep.subr.bf16.mxu0 %v1952
    %2548 = vmatpush1.bf16.msra.mxu0 %v1951
    %2549 = vmatprep.subr.bf16.mxu0 %v1956
    %2550 = vmatpush1.bf16.msra.mxu0 %v1955
    %2551 = vmatprep.subr.bf16.mxu0 %v1960
    %2552 = vmatpush1.bf16.msra.mxu0 %v1959
    %2553 = vmatprep.subr.bf16.mxu0 %v1964
    %2554 = vmatpush1.bf16.msra.mxu0 %v1963
    %2555 = vmatprep.subr.bf16.mxu0 %v2328
    %2556 = vmatpush1.bf16.msra.mxu0 %v2325
    %2557 = vmatprep.subr.bf16.mxu0 0
    %2558 = vmatpush1.bf16.msra.mxu0 0
    %2559 = vmatprep.subr.bf16.mxu0 0
    %2560 = vmatpush1.bf16.msra.mxu0 0
    %2561 = vmatprep.subr.bf16.mxu0 0
    %2562 = vmatpush1.bf16.msra.mxu0 0
    %2563 = vmatprep.subr.bf16.mxu0 0
    %2564 = vmatpush1.bf16.msra.mxu0 0
    %2565 = vmatprep.subr.bf16.mxu0 0
    %2566 = vmatpush1.bf16.msra.mxu0 0
    %2567 = vmatprep.subr.bf16.mxu0 0
    %2568 = vmatpush1.bf16.msra.mxu0 0
    %2569 = vmatprep.subr.bf16.mxu0 0
    %2570 = vmatpush1.bf16.msra.mxu0 0
    %2571 = vmatprep.subr.bf16.mxu0 0
    %2572 = vmatpush1.bf16.msra.mxu0 0
    %2573 = vmatprep.mubr.bf16.mxu0 0
    %2574 = vmatmul.mubr.bf16.gmra.mrb[0].mxu0 %v2321
    %v2575 = vpop.f32.mrb[0].mxu0
    %v2576 = vadd.f32 %v2535, %v2575
    %v2577 = vpop.f32.mrb[0].mxu0
    %v2578 = vadd.f32 %v2537, %v2577
    %v2579 = vpop.f32.mrb[0].mxu0
    %v2580 = vpop.f32.mrb[0].mxu0
    %2581 = vdwg.mxu0
    %2582 = vmatprep.subr.bf16.mxu0 %v1622
    %2583 = vmatpush1.bf16.msra.mxu0 %v1621
    %2584 = vmatprep.subr.bf16.mxu0 %v1626
    %2585 = vmatpush1.bf16.msra.mxu0 %v1625
    %2586 = vmatprep.subr.bf16.mxu0 %v1630
    %2587 = vmatpush1.bf16.msra.mxu0 %v1629
    %2588 = vmatprep.subr.bf16.mxu0 %v1634
    %2589 = vmatpush1.bf16.msra.mxu0 %v1633
    %2590 = vmatprep.subr.bf16.mxu0 %v1638
    %2591 = vmatpush1.bf16.msra.mxu0 %v1637
    %2592 = vmatprep.subr.bf16.mxu0 %v1642
    %2593 = vmatpush1.bf16.msra.mxu0 %v1641
    %2594 = vmatprep.subr.bf16.mxu0 %v1646
    %2595 = vmatpush1.bf16.msra.mxu0 %v1645
    %2596 = vmatprep.subr.bf16.mxu0 %v1650
    %2597 = vmatpush1.bf16.msra.mxu0 %v1649
    %2598 = vmatprep.subr.bf16.mxu0 %v1654
    %2599 = vmatpush1.bf16.msra.mxu0 %v1653
    %2600 = vmatprep.subr.bf16.mxu0 %v1658
    %2601 = vmatpush1.bf16.msra.mxu0 %v1657
    %2602 = vmatprep.subr.bf16.mxu0 %v1662
    %2603 = vmatpush1.bf16.msra.mxu0 %v1661
    %2604 = vmatprep.subr.bf16.mxu0 %v1666
    %2605 = vmatpush1.bf16.msra.mxu0 %v1665
    %2606 = vmatprep.subr.bf16.mxu0 %v1670
    %2607 = vmatpush1.bf16.msra.mxu0 %v1669
    %2608 = vmatprep.subr.bf16.mxu0 %v1674
    %2609 = vmatpush1.bf16.msra.mxu0 %v1673
    %2610 = vmatprep.subr.bf16.mxu0 %v1678
    %2611 = vmatpush1.bf16.msra.mxu0 %v1677
    %2612 = vmatprep.subr.bf16.mxu0 %v1682
    %2613 = vmatpush1.bf16.msra.mxu0 %v1681
    %2614 = vmatprep.mubr.bf16.mxu0 %v543
    %2615 = vmatmul.mubr.bf16.gmra.mrb[0].mxu0 %v542
    %v2616 = vpop.f32.mrb[0].mxu0
    %v2617 = vadd.f32 %v516, %v2616
    %v2618 = vpop.f32.mrb[0].mxu0
    %v2619 = vadd.f32 %v520, %v2618
    %v2620 = vpop.f32.mrb[0].mxu0
    %v2621 = vpop.f32.mrb[0].mxu0
    %2622 = vdwg.mxu0
    %2623 = vmatprep.subr.bf16.mxu0 %v1686
    %2624 = vmatpush1.bf16.msra.mxu0 %v1685
    %2625 = vmatprep.subr.bf16.mxu0 %v1690
    %2626 = vmatpush1.bf16.msra.mxu0 %v1689
    %2627 = vmatprep.subr.bf16.mxu0 %v1694
    %2628 = vmatpush1.bf16.msra.mxu0 %v1693
    %2629 = vmatprep.subr.bf16.mxu0 %v1698
    %2630 = vmatpush1.bf16.msra.mxu0 %v1697
    %2631 = vmatprep.subr.bf16.mxu0 %v1702
    %2632 = vmatpush1.bf16.msra.mxu0 %v1701
    %2633 = vmatprep.subr.bf16.mxu0 %v1706
    %2634 = vmatpush1.bf16.msra.mxu0 %v1705
    %2635 = vmatprep.subr.bf16.mxu0 %v1710
    %2636 = vmatpush1.bf16.msra.mxu0 %v1709
    %2637 = vmatprep.subr.bf16.mxu0 %v1714
    %2638 = vmatpush1.bf16.msra.mxu0 %v1713
    %2639 = vmatprep.subr.bf16.mxu0 %v1718
    %2640 = vmatpush1.bf16.msra.mxu0 %v1717
    %2641 = vmatprep.subr.bf16.mxu0 %v1722
    %2642 = vmatpush1.bf16.msra.mxu0 %v1721
    %2643 = vmatprep.subr.bf16.mxu0 %v1726
    %2644 = vmatpush1.bf16.msra.mxu0 %v1725
    %2645 = vmatprep.subr.bf16.mxu0 %v1730
    %2646 = vmatpush1.bf16.msra.mxu0 %v1729
    %2647 = vmatprep.subr.bf16.mxu0 %v1734
    %2648 = vmatpush1.bf16.msra.mxu0 %v1733
    %2649 = vmatprep.subr.bf16.mxu0 %v1738
    %2650 = vmatpush1.bf16.msra.mxu0 %v1737
    %2651 = vmatprep.subr.bf16.mxu0 %v1742
    %2652 = vmatpush1.bf16.msra.mxu0 %v1741
    %2653 = vmatprep.subr.bf16.mxu0 %v1746
    %2654 = vmatpush1.bf16.msra.mxu0 %v1745
    %2655 = vmatprep.mubr.bf16.mxu0 %v545
    %2656 = vmatmul.mubr.bf16.gmra.mrb[0].mxu0 %v544
    %v2657 = vpop.f32.mrb[0].mxu0
    %v2658 = vadd.f32 %v2617, %v2657
    %v2659 = vpop.f32.mrb[0].mxu0
    %v2660 = vadd.f32 %v2619, %v2659
    %v2661 = vpop.f32.mrb[0].mxu0
    %v2662 = vpop.f32.mrb[0].mxu0
    %2663 = vdwg.mxu0
    %2664 = vmatprep.subr.bf16.mxu0 %v1750
    %2665 = vmatpush1.bf16.msra.mxu0 %v1749
    %2666 = vmatprep.subr.bf16.mxu0 %v1754
    %2667 = vmatpush1.bf16.msra.mxu0 %v1753
    %2668 = vmatprep.subr.bf16.mxu0 %v1758
    %2669 = vmatpush1.bf16.msra.mxu0 %v1757
    %2670 = vmatprep.subr.bf16.mxu0 %v1762
    %2671 = vmatpush1.bf16.msra.mxu0 %v1761
    %2672 = vmatprep.subr.bf16.mxu0 %v1766
    %2673 = vmatpush1.bf16.msra.mxu0 %v1765
    %2674 = vmatprep.subr.bf16.mxu0 %v1770
    %2675 = vmatpush1.bf16.msra.mxu0 %v1769
    %2676 = vmatprep.subr.bf16.mxu0 %v1774
    %2677 = vmatpush1.bf16.msra.mxu0 %v1773
    %2678 = vmatprep.subr.bf16.mxu0 %v1778
    %2679 = vmatpush1.bf16.msra.mxu0 %v1777
    %2680 = vmatprep.subr.bf16.mxu0 %v1782
    %2681 = vmatpush1.bf16.msra.mxu0 %v1781
    %2682 = vmatprep.subr.bf16.mxu0 %v1786
    %2683 = vmatpush1.bf16.msra.mxu0 %v1785
    %2684 = vmatprep.subr.bf16.mxu0 %v1790
    %2685 = vmatpush1.bf16.msra.mxu0 %v1789
    %2686 = vmatprep.subr.bf16.mxu0 %v1794
    %2687 = vmatpush1.bf16.msra.mxu0 %v1793
    %2688 = vmatprep.subr.bf16.mxu0 %v1798
    %2689 = vmatpush1.bf16.msra.mxu0 %v1797
    %2690 = vmatprep.subr.bf16.mxu0 %v1802
    %2691 = vmatpush1.bf16.msra.mxu0 %v1801
    %2692 = vmatprep.subr.bf16.mxu0 %v1806
    %2693 = vmatpush1.bf16.msra.mxu0 %v1805
    %2694 = vmatprep.subr.bf16.mxu0 %v1810
    %2695 = vmatpush1.bf16.msra.mxu0 %v1809
    %2696 = vmatprep.mubr.bf16.mxu0 %v547
    %2697 = vmatmul.mubr.bf16.gmra.mrb[0].mxu0 %v546
    %v2698 = vpop.f32.mrb[0].mxu0
    %v2699 = vadd.f32 %v2658, %v2698
    %v2700 = vpop.f32.mrb[0].mxu0
    %v2701 = vadd.f32 %v2660, %v2700
    %v2702 = vpop.f32.mrb[0].mxu0
    %v2703 = vpop.f32.mrb[0].mxu0
    %2704 = vdwg.mxu0
    %2705 = vmatprep.subr.bf16.mxu0 %v1814
    %2706 = vmatpush1.bf16.msra.mxu0 %v1813
    %2707 = vmatprep.subr.bf16.mxu0 %v1818
    %2708 = vmatpush1.bf16.msra.mxu0 %v1817
    %2709 = vmatprep.subr.bf16.mxu0 %v1822
    %2710 = vmatpush1.bf16.msra.mxu0 %v1821
    %2711 = vmatprep.subr.bf16.mxu0 %v1826
    %2712 = vmatpush1.bf16.msra.mxu0 %v1825
    %2713 = vmatprep.subr.bf16.mxu0 %v1830
    %2714 = vmatpush1.bf16.msra.mxu0 %v1829
    %2715 = vmatprep.subr.bf16.mxu0 %v1834
    %2716 = vmatpush1.bf16.msra.mxu0 %v1833
    %2717 = vmatprep.subr.bf16.mxu0 %v1838
    %2718 = vmatpush1.bf16.msra.mxu0 %v1837
    %2719 = vmatprep.subr.bf16.mxu0 %v1842
    %2720 = vmatpush1.bf16.msra.mxu0 %v1841
    %2721 = vmatprep.subr.bf16.mxu0 %v1846
    %2722 = vmatpush1.bf16.msra.mxu0 %v1845
    %2723 = vmatprep.subr.bf16.mxu0 %v1850
    %2724 = vmatpush1.bf16.msra.mxu0 %v1849
    %2725 = vmatprep.subr.bf16.mxu0 %v1854
    %2726 = vmatpush1.bf16.msra.mxu0 %v1853
    %2727 = vmatprep.subr.bf16.mxu0 %v1858
    %2728 = vmatpush1.bf16.msra.mxu0 %v1857
    %2729 = vmatprep.subr.bf16.mxu0 %v1862
    %2730 = vmatpush1.bf16.msra.mxu0 %v1861
    %2731 = vmatprep.subr.bf16.mxu0 %v1866
    %2732 = vmatpush1.bf16.msra.mxu0 %v1865
    %2733 = vmatprep.subr.bf16.mxu0 %v1870
    %2734 = vmatpush1.bf16.msra.mxu0 %v1869
    %2735 = vmatprep.subr.bf16.mxu0 %v1874
    %2736 = vmatpush1.bf16.msra.mxu0 %v1873
    %2737 = vmatprep.mubr.bf16.mxu0 %v549
    %2738 = vmatmul.mubr.bf16.gmra.mrb[0].mxu0 %v548
    %v2739 = vpop.f32.mrb[0].mxu0
    %v2740 = vadd.f32 %v2699, %v2739
    %v2741 = vpop.f32.mrb[0].mxu0
    %v2742 = vadd.f32 %v2701, %v2741
    %v2743 = vpop.f32.mrb[0].mxu0
    %v2744 = vpop.f32.mrb[0].mxu0
    %2745 = vdwg.mxu0
    %2746 = vmatprep.subr.bf16.mxu0 %v1878
    %2747 = vmatpush1.bf16.msra.mxu0 %v1877
    %2748 = vmatprep.subr.bf16.mxu0 %v1882
    %2749 = vmatpush1.bf16.msra.mxu0 %v1881
    %2750 = vmatprep.subr.bf16.mxu0 %v1886
    %2751 = vmatpush1.bf16.msra.mxu0 %v1885
    %2752 = vmatprep.subr.bf16.mxu0 %v1890
    %2753 = vmatpush1.bf16.msra.mxu0 %v1889
    %2754 = vmatprep.subr.bf16.mxu0 %v1894
    %2755 = vmatpush1.bf16.msra.mxu0 %v1893
    %2756 = vmatprep.subr.bf16.mxu0 %v1898
    %2757 = vmatpush1.bf16.msra.mxu0 %v1897
    %2758 = vmatprep.subr.bf16.mxu0 %v1902
    %2759 = vmatpush1.bf16.msra.mxu0 %v1901
    %2760 = vmatprep.subr.bf16.mxu0 %v1906
    %2761 = vmatpush1.bf16.msra.mxu0 %v1905
    %2762 = vmatprep.subr.bf16.mxu0 %v1910
    %2763 = vmatpush1.bf16.msra.mxu0 %v1909
    %2764 = vmatprep.subr.bf16.mxu0 %v1914
    %2765 = vmatpush1.bf16.msra.mxu0 %v1913
    %2766 = vmatprep.subr.bf16.mxu0 %v1918
    %2767 = vmatpush1.bf16.msra.mxu0 %v1917
    %2768 = vmatprep.subr.bf16.mxu0 %v1922
    %2769 = vmatpush1.bf16.msra.mxu0 %v1921
    %2770 = vmatprep.subr.bf16.mxu0 %v1926
    %2771 = vmatpush1.bf16.msra.mxu0 %v1925
    %2772 = vmatprep.subr.bf16.mxu0 %v1930
    %2773 = vmatpush1.bf16.msra.mxu0 %v1929
    %2774 = vmatprep.subr.bf16.mxu0 %v1934
    %2775 = vmatpush1.bf16.msra.mxu0 %v1933
    %2776 = vmatprep.subr.bf16.mxu0 %v1938
    %2777 = vmatpush1.bf16.msra.mxu0 %v1937
    %2778 = vmatprep.mubr.bf16.mxu0 %v551
    %2779 = vmatmul.mubr.bf16.gmra.mrb[0].mxu0 %v550
    %v2780 = vpop.f32.mrb[0].mxu0
    %v2781 = vadd.f32 %v2740, %v2780
    %v2782 = vpop.f32.mrb[0].mxu0
    %v2783 = vadd.f32 %v2742, %v2782
    %v2784 = vpop.f32.mrb[0].mxu0
    %v2785 = vpop.f32.mrb[0].mxu0
    %2786 = vdwg.mxu0
    %2787 = vmatprep.subr.bf16.mxu0 %v1942
    %2788 = vmatpush1.bf16.msra.mxu0 %v1941
    %2789 = vmatprep.subr.bf16.mxu0 %v1946
    %2790 = vmatpush1.bf16.msra.mxu0 %v1945
    %2791 = vmatprep.subr.bf16.mxu0 %v1950
    %2792 = vmatpush1.bf16.msra.mxu0 %v1949
    %2793 = vmatprep.subr.bf16.mxu0 %v1954
    %2794 = vmatpush1.bf16.msra.mxu0 %v1953
    %2795 = vmatprep.subr.bf16.mxu0 %v1958
    %2796 = vmatpush1.bf16.msra.mxu0 %v1957
    %2797 = vmatprep.subr.bf16.mxu0 %v1962
    %2798 = vmatpush1.bf16.msra.mxu0 %v1961
    %2799 = vmatprep.subr.bf16.mxu0 %v1966
    %2800 = vmatpush1.bf16.msra.mxu0 %v1965
    %2801 = vmatprep.subr.bf16.mxu0 %v2334
    %2802 = vmatpush1.bf16.msra.mxu0 %v2331
    %2803 = vmatprep.subr.bf16.mxu0 0
    %2804 = vmatpush1.bf16.msra.mxu0 0
    %2805 = vmatprep.subr.bf16.mxu0 0
    %2806 = vmatpush1.bf16.msra.mxu0 0
    %2807 = vmatprep.subr.bf16.mxu0 0
    %2808 = vmatpush1.bf16.msra.mxu0 0
    %2809 = vmatprep.subr.bf16.mxu0 0
    %2810 = vmatpush1.bf16.msra.mxu0 0
    %2811 = vmatprep.subr.bf16.mxu0 0
    %2812 = vmatpush1.bf16.msra.mxu0 0
    %2813 = vmatprep.subr.bf16.mxu0 0
    %2814 = vmatpush1.bf16.msra.mxu0 0
    %2815 = vmatprep.subr.bf16.mxu0 0
    %2816 = vmatpush1.bf16.msra.mxu0 0
    %2817 = vmatprep.subr.bf16.mxu0 0
    %2818 = vmatpush1.bf16.msra.mxu0 0
    %2819 = vmatprep.mubr.bf16.mxu0 0
    %2820 = vmatmul.mubr.bf16.gmra.mrb[0].mxu0 %v2321
    %v2821 = vpop.f32.mrb[0].mxu0
    %v2822 = vadd.f32 %v2781, %v2821
    %v2823 = vpop.f32.mrb[0].mxu0
    %v2824 = vadd.f32 %v2783, %v2823
    %v2825 = vpop.f32.mrb[0].mxu0
    %v2826 = vpop.f32.mrb[0].mxu0
    %2827 = vdwg.mxu0
    %v2828 = vmax.f32 %v2576, 0.0
    %v2829 = vmax.f32 %v2578, 0.0
    %v2830 = vmax.f32 %v2822, 0.0
    %v2831 = vmax.f32 %v2824, 0.0
    %v2832 = vpack.c.bf16 %v2828, %v2828
    %v2833 = vpack.c.bf16 %v2829, %v2829
    %v2834 = vpack.c.bf16 %v2830, %v2830
    %v2835 = vpack.c.bf16 %v2831, %v2831
    %v2836 = vld [vmem:[#allocation7] sm:$0xff]
    %v2837 = vld [vmem:[#allocation7 + $0x8] sm:$0xff]
    %v2838 = vld [vmem:[#allocation7 + $0x10] sm:$0xff]
    %v2839 = vld [vmem:[#allocation7 + $0x18] sm:$0xff]
    %v2840 = vld [vmem:[#allocation7 + $0x20] sm:$0xff]
    %v2841 = vld [vmem:[#allocation7 + $0x28] sm:$0xff]
    %v2842 = vld [vmem:[#allocation7 + $0x30] sm:$0xff]
    %v2843 = vld [vmem:[#allocation7 + $0x38] sm:$0xff]
    %v2844 = vld [vmem:[#allocation7 + $0x40] sm:$0xff]
    %v2845 = vld [vmem:[#allocation7 + $0x48] sm:$0xff]
    %v2846 = vld [vmem:[#allocation7 + $0x50] sm:$0xff]
    %v2847 = vld [vmem:[#allocation7 + $0x58] sm:$0xff]
    %v2848 = vld [vmem:[#allocation7 + $0x60] sm:$0xff]
    %v2849 = vld [vmem:[#allocation7 + $0x68] sm:$0xff]
    %v2850 = vld [vmem:[#allocation7 + $0x70] sm:$0xff]
    %v2851 = vld [vmem:[#allocation7 + $0x78] sm:$0xff]
    %v2852 = vld [vmem:[#allocation7 + $0x80] sm:$0xff]
    %v2853 = vld [vmem:[#allocation7 + $0x88] sm:$0xff]
    %v2854 = vld [vmem:[#allocation7 + $0x90] sm:$0xff]
    %v2855 = vld [vmem:[#allocation7 + $0x98] sm:$0xff]
    %v2856 = vld [vmem:[#allocation7 + $0xa0] sm:$0xff]
    %v2857 = vld [vmem:[#allocation7 + $0xa8] sm:$0xff]
    %v2858 = vld [vmem:[#allocation7 + $0xb0] sm:$0xff]
    %v2859 = vld [vmem:[#allocation7 + $0xb8] sm:$0xff]
    %v2860 = vld [vmem:[#allocation7 + $0xc0] sm:$0xff]
    %v2861 = vld [vmem:[#allocation7 + $0xc8] sm:$0xff]
    %v2862 = vld [vmem:[#allocation7 + $0xd0] sm:$0xff]
    %v2863 = vld [vmem:[#allocation7 + $0xd8] sm:$0xff]
    %v2864 = vld [vmem:[#allocation7 + $0xe0] sm:$0xff]
    %v2865 = vld [vmem:[#allocation7 + $0xe8] sm:$0xff]
    %v2866 = vld [vmem:[#allocation7 + $0xf0] sm:$0xff]
    %v2867 = vld [vmem:[#allocation7 + $0xf8] sm:$0xff]
    %v2868 = vld [vmem:[#allocation7 + $0x100] sm:$0xff]
    %v2869 = vld [vmem:[#allocation7 + $0x108] sm:$0xff]
    %v2870 = vld [vmem:[#allocation7 + $0x110] sm:$0xff]
    %v2871 = vld [vmem:[#allocation7 + $0x118] sm:$0xff]
    %v2872 = vld [vmem:[#allocation7 + $0x120] sm:$0xff]
    %v2873 = vld [vmem:[#allocation7 + $0x128] sm:$0xff]
    %v2874 = vld [vmem:[#allocation7 + $0x130] sm:$0xff]
    %v2875 = vld [vmem:[#allocation7 + $0x138] sm:$0xff]
    %v2876 = vld [vmem:[#allocation7 + $0x140] sm:$0xff]
    %v2877 = vld [vmem:[#allocation7 + $0x148] sm:$0xff]
    %v2878 = vld [vmem:[#allocation7 + $0x150] sm:$0xff]
    %v2879 = vld [vmem:[#allocation7 + $0x158] sm:$0xff]
    %v2880 = vld [vmem:[#allocation7 + $0x160] sm:$0xff]
    %v2881 = vld [vmem:[#allocation7 + $0x168] sm:$0xff]
    %v2882 = vld [vmem:[#allocation7 + $0x170] sm:$0xff]
    %v2883 = vld [vmem:[#allocation7 + $0x178] sm:$0xff]
    %v2884 = vld [vmem:[#allocation7 + $0x180] sm:$0xff]
    %v2885 = vld [vmem:[#allocation7 + $0x188] sm:$0xff]
    %v2886 = vld [vmem:[#allocation7 + $0x190] sm:$0xff]
    %v2887 = vld [vmem:[#allocation7 + $0x198] sm:$0xff]
    %v2888 = vld [vmem:[#allocation7 + $0x1a0] sm:$0xff]
    %v2889 = vld [vmem:[#allocation7 + $0x1a8] sm:$0xff]
    %v2890 = vld [vmem:[#allocation7 + $0x1b0] sm:$0xff]
    %v2891 = vld [vmem:[#allocation7 + $0x1b8] sm:$0xff]
    %v2892 = vld [vmem:[#allocation7 + $0x1c0] sm:$0xff]
    %v2893 = vld [vmem:[#allocation7 + $0x1c8] sm:$0xff]
    %v2894 = vld [vmem:[#allocation7 + $0x1d0] sm:$0xff]
    %v2895 = vld [vmem:[#allocation7 + $0x1d8] sm:$0xff]
    %v2896 = vld [vmem:[#allocation7 + $0x1e0] sm:$0xff]
    %v2897 = vld [vmem:[#allocation7 + $0x1e8] sm:$0xff]
    %v2898 = vld [vmem:[#allocation7 + $0x1f0] sm:$0xff]
    %v2899 = vld [vmem:[#allocation7 + $0x1f8] sm:$0xff]
    %v2900 = vld [vmem:[#allocation9] sm:$0x3]
    %v2902 = vlaneseq
    %v2903 = vshrl.u32 %v2902, 7
    %v2904 = vsub.s32 0, %v2903
    %v2905 = vrot.slane %v2900, %v2904
    %v2906 = vlaneseq
    %v2907 = vshrl.u32 %v2906, 7
    %v2908 = vsub.s32 1, %v2907
    %v2909 = vrot.slane %v2900, %v2908
    %v2976 = vunpack.c.l.b16 %v2836
    %v2977 = vunpack.c.h.b16 %v2836
    %v2978 = vunpack.c.l.b16 %v2837
    %v2979 = vunpack.c.h.b16 %v2837
    %v2980 = vunpack.c.l.b16 %v2838
    %v2981 = vunpack.c.h.b16 %v2838
    %v2982 = vunpack.c.l.b16 %v2839
    %v2983 = vunpack.c.h.b16 %v2839
    %v2984 = vunpack.c.l.b16 %v2840
    %v2985 = vunpack.c.h.b16 %v2840
    %v2986 = vunpack.c.l.b16 %v2841
    %v2987 = vunpack.c.h.b16 %v2841
    %v2988 = vunpack.c.l.b16 %v2842
    %v2989 = vunpack.c.h.b16 %v2842
    %v2990 = vunpack.c.l.b16 %v2843
    %v2991 = vunpack.c.h.b16 %v2843
    %v2992 = vunpack.c.l.b16 %v2844
    %v2993 = vunpack.c.h.b16 %v2844
    %v2994 = vunpack.c.l.b16 %v2845
    %v2995 = vunpack.c.h.b16 %v2845
    %v2996 = vunpack.c.l.b16 %v2846
    %v2997 = vunpack.c.h.b16 %v2846
    %v2998 = vunpack.c.l.b16 %v2847
    %v2999 = vunpack.c.h.b16 %v2847
    %v3000 = vunpack.c.l.b16 %v2848
    %v3001 = vunpack.c.h.b16 %v2848
    %v3002 = vunpack.c.l.b16 %v2849
    %v3003 = vunpack.c.h.b16 %v2849
    %v3004 = vunpack.c.l.b16 %v2850
    %v3005 = vunpack.c.h.b16 %v2850
    %v3006 = vunpack.c.l.b16 %v2851
    %v3007 = vunpack.c.h.b16 %v2851
    %v3008 = vunpack.c.l.b16 %v2852
    %v3009 = vunpack.c.h.b16 %v2852
    %v3010 = vunpack.c.l.b16 %v2853
    %v3011 = vunpack.c.h.b16 %v2853
    %v3012 = vunpack.c.l.b16 %v2854
    %v3013 = vunpack.c.h.b16 %v2854
    %v3014 = vunpack.c.l.b16 %v2855
    %v3015 = vunpack.c.h.b16 %v2855
    %v3016 = vunpack.c.l.b16 %v2856
    %v3017 = vunpack.c.h.b16 %v2856
    %v3018 = vunpack.c.l.b16 %v2857
    %v3019 = vunpack.c.h.b16 %v2857
    %v3020 = vunpack.c.l.b16 %v2858
    %v3021 = vunpack.c.h.b16 %v2858
    %v3022 = vunpack.c.l.b16 %v2859
    %v3023 = vunpack.c.h.b16 %v2859
    %v3024 = vunpack.c.l.b16 %v2860
    %v3025 = vunpack.c.h.b16 %v2860
    %v3026 = vunpack.c.l.b16 %v2861
    %v3027 = vunpack.c.h.b16 %v2861
    %v3028 = vunpack.c.l.b16 %v2862
    %v3029 = vunpack.c.h.b16 %v2862
    %v3030 = vunpack.c.l.b16 %v2863
    %v3031 = vunpack.c.h.b16 %v2863
    %v3032 = vunpack.c.l.b16 %v2864
    %v3033 = vunpack.c.h.b16 %v2864
    %v3034 = vunpack.c.l.b16 %v2865
    %v3035 = vunpack.c.h.b16 %v2865
    %v3036 = vunpack.c.l.b16 %v2866
    %v3037 = vunpack.c.h.b16 %v2866
    %v3038 = vunpack.c.l.b16 %v2867
    %v3039 = vunpack.c.h.b16 %v2867
    %v3040 = vunpack.c.l.b16 %v2868
    %v3041 = vunpack.c.h.b16 %v2868
    %v3042 = vunpack.c.l.b16 %v2869
    %v3043 = vunpack.c.h.b16 %v2869
    %v3044 = vunpack.c.l.b16 %v2870
    %v3045 = vunpack.c.h.b16 %v2870
    %v3046 = vunpack.c.l.b16 %v2871
    %v3047 = vunpack.c.h.b16 %v2871
    %v3048 = vunpack.c.l.b16 %v2872
    %v3049 = vunpack.c.h.b16 %v2872
    %v3050 = vunpack.c.l.b16 %v2873
    %v3051 = vunpack.c.h.b16 %v2873
    %v3052 = vunpack.c.l.b16 %v2874
    %v3053 = vunpack.c.h.b16 %v2874
    %v3054 = vunpack.c.l.b16 %v2875
    %v3055 = vunpack.c.h.b16 %v2875
    %v3056 = vunpack.c.l.b16 %v2876
    %v3057 = vunpack.c.h.b16 %v2876
    %v3058 = vunpack.c.l.b16 %v2877
    %v3059 = vunpack.c.h.b16 %v2877
    %v3060 = vunpack.c.l.b16 %v2878
    %v3061 = vunpack.c.h.b16 %v2878
    %v3062 = vunpack.c.l.b16 %v2879
    %v3063 = vunpack.c.h.b16 %v2879
    %v3064 = vunpack.c.l.b16 %v2880
    %v3065 = vunpack.c.h.b16 %v2880
    %v3066 = vunpack.c.l.b16 %v2881
    %v3067 = vunpack.c.h.b16 %v2881
    %v3068 = vunpack.c.l.b16 %v2882
    %v3069 = vunpack.c.h.b16 %v2882
    %v3070 = vunpack.c.l.b16 %v2883
    %v3071 = vunpack.c.h.b16 %v2883
    %v3072 = vunpack.c.l.b16 %v2884
    %v3073 = vunpack.c.h.b16 %v2884
    %v3074 = vunpack.c.l.b16 %v2885
    %v3075 = vunpack.c.h.b16 %v2885
    %v3076 = vunpack.c.l.b16 %v2886
    %v3077 = vunpack.c.h.b16 %v2886
    %v3078 = vunpack.c.l.b16 %v2887
    %v3079 = vunpack.c.h.b16 %v2887
    %v3080 = vunpack.c.l.b16 %v2888
    %v3081 = vunpack.c.h.b16 %v2888
    %v3082 = vunpack.c.l.b16 %v2889
    %v3083 = vunpack.c.h.b16 %v2889
    %v3084 = vunpack.c.l.b16 %v2890
    %v3085 = vunpack.c.h.b16 %v2890
    %v3086 = vunpack.c.l.b16 %v2891
    %v3087 = vunpack.c.h.b16 %v2891
    %v3088 = vunpack.c.l.b16 %v2892
    %v3089 = vunpack.c.h.b16 %v2892
    %v3090 = vunpack.c.l.b16 %v2893
    %v3091 = vunpack.c.h.b16 %v2893
    %v3092 = vunpack.c.l.b16 %v2894
    %v3093 = vunpack.c.h.b16 %v2894
    %v3094 = vunpack.c.l.b16 %v2895
    %v3095 = vunpack.c.h.b16 %v2895
    %v3096 = vunpack.c.l.b16 %v2896
    %v3097 = vunpack.c.h.b16 %v2896
    %v3098 = vunpack.c.l.b16 %v2897
    %v3099 = vunpack.c.h.b16 %v2897
    %v3100 = vunpack.c.l.b16 %v2898
    %v3101 = vunpack.c.h.b16 %v2898
    %v3102 = vunpack.c.l.b16 %v2899
    %v3103 = vunpack.c.h.b16 %v2899
    %v3104 = vpack.c.b16 %v2978, %v2976
    %v3105 = vpack.c.b16 %v2979, %v2977
    %v3106 = vpack.c.b16 %v2982, %v2980
    %v3107 = vpack.c.b16 %v2983, %v2981
    %v3108 = vpack.c.b16 %v2986, %v2984
    %v3109 = vpack.c.b16 %v2987, %v2985
    %v3110 = vpack.c.b16 %v2990, %v2988
    %v3111 = vpack.c.b16 %v2991, %v2989
    %v3112 = vpack.c.b16 %v2994, %v2992
    %v3113 = vpack.c.b16 %v2995, %v2993
    %v3114 = vpack.c.b16 %v2998, %v2996
    %v3115 = vpack.c.b16 %v2999, %v2997
    %v3116 = vpack.c.b16 %v3002, %v3000
    %v3117 = vpack.c.b16 %v3003, %v3001
    %v3118 = vpack.c.b16 %v3006, %v3004
    %v3119 = vpack.c.b16 %v3007, %v3005
    %v3120 = vpack.c.b16 %v3010, %v3008
    %v3121 = vpack.c.b16 %v3011, %v3009
    %v3122 = vpack.c.b16 %v3014, %v3012
    %v3123 = vpack.c.b16 %v3015, %v3013
    %v3124 = vpack.c.b16 %v3018, %v3016
    %v3125 = vpack.c.b16 %v3019, %v3017
    %v3126 = vpack.c.b16 %v3022, %v3020
    %v3127 = vpack.c.b16 %v3023, %v3021
    %v3128 = vpack.c.b16 %v3026, %v3024
    %v3129 = vpack.c.b16 %v3027, %v3025
    %v3130 = vpack.c.b16 %v3030, %v3028
    %v3131 = vpack.c.b16 %v3031, %v3029
    %v3132 = vpack.c.b16 %v3034, %v3032
    %v3133 = vpack.c.b16 %v3035, %v3033
    %v3134 = vpack.c.b16 %v3038, %v3036
    %v3135 = vpack.c.b16 %v3039, %v3037
    %v3136 = vpack.c.b16 %v3042, %v3040
    %v3137 = vpack.c.b16 %v3043, %v3041
    %v3138 = vpack.c.b16 %v3046, %v3044
    %v3139 = vpack.c.b16 %v3047, %v3045
    %v3140 = vpack.c.b16 %v3050, %v3048
    %v3141 = vpack.c.b16 %v3051, %v3049
    %v3142 = vpack.c.b16 %v3054, %v3052
    %v3143 = vpack.c.b16 %v3055, %v3053
    %v3144 = vpack.c.b16 %v3058, %v3056
    %v3145 = vpack.c.b16 %v3059, %v3057
    %v3146 = vpack.c.b16 %v3062, %v3060
    %v3147 = vpack.c.b16 %v3063, %v3061
    %v3148 = vpack.c.b16 %v3066, %v3064
    %v3149 = vpack.c.b16 %v3067, %v3065
    %v3150 = vpack.c.b16 %v3070, %v3068
    %v3151 = vpack.c.b16 %v3071, %v3069
    %v3152 = vpack.c.b16 %v3074, %v3072
    %v3153 = vpack.c.b16 %v3075, %v3073
    %v3154 = vpack.c.b16 %v3078, %v3076
    %v3155 = vpack.c.b16 %v3079, %v3077
    %v3156 = vpack.c.b16 %v3082, %v3080
    %v3157 = vpack.c.b16 %v3083, %v3081
    %v3158 = vpack.c.b16 %v3086, %v3084
    %v3159 = vpack.c.b16 %v3087, %v3085
    %v3160 = vpack.c.b16 %v3090, %v3088
    %v3161 = vpack.c.b16 %v3091, %v3089
    %v3162 = vpack.c.b16 %v3094, %v3092
    %v3163 = vpack.c.b16 %v3095, %v3093
    %v3164 = vpack.c.b16 %v3098, %v3096
    %v3165 = vpack.c.b16 %v3099, %v3097
    %v3166 = vpack.c.b16 %v3102, %v3100
    %v3167 = vpack.c.b16 %v3103, %v3101
    %3232 = vmatprep.subr.bf16.mxu0 %v3105
    %3233 = vmatpush1.bf16.msra.mxu0 %v3104
    %3234 = vmatprep.subr.bf16.mxu0 %v3107
    %3235 = vmatpush1.bf16.msra.mxu0 %v3106
    %3236 = vmatprep.subr.bf16.mxu0 %v3109
    %3237 = vmatpush1.bf16.msra.mxu0 %v3108
    %3238 = vmatprep.subr.bf16.mxu0 %v3111
    %3239 = vmatpush1.bf16.msra.mxu0 %v3110
    %3240 = vmatprep.subr.bf16.mxu0 %v3113
    %3241 = vmatpush1.bf16.msra.mxu0 %v3112
    %3242 = vmatprep.subr.bf16.mxu0 %v3115
    %3243 = vmatpush1.bf16.msra.mxu0 %v3114
    %3244 = vmatprep.subr.bf16.mxu0 %v3117
    %3245 = vmatpush1.bf16.msra.mxu0 %v3116
    %3246 = vmatprep.subr.bf16.mxu0 %v3119
    %3247 = vmatpush1.bf16.msra.mxu0 %v3118
    %3248 = vmatprep.subr.bf16.mxu0 %v3121
    %3249 = vmatpush1.bf16.msra.mxu0 %v3120
    %3250 = vmatprep.subr.bf16.mxu0 %v3123
    %3251 = vmatpush1.bf16.msra.mxu0 %v3122
    %3252 = vmatprep.subr.bf16.mxu0 %v3125
    %3253 = vmatpush1.bf16.msra.mxu0 %v3124
    %3254 = vmatprep.subr.bf16.mxu0 %v3127
    %3255 = vmatpush1.bf16.msra.mxu0 %v3126
    %3256 = vmatprep.subr.bf16.mxu0 %v3129
    %3257 = vmatpush1.bf16.msra.mxu0 %v3128
    %3258 = vmatprep.subr.bf16.mxu0 %v3131
    %3259 = vmatpush1.bf16.msra.mxu0 %v3130
    %3260 = vmatprep.subr.bf16.mxu0 %v3133
    %3261 = vmatpush1.bf16.msra.mxu0 %v3132
    %3262 = vmatprep.subr.bf16.mxu0 %v3135
    %3263 = vmatpush1.bf16.msra.mxu0 %v3134
    %3264 = vmatprep.mubr.bf16.mxu0 %v2833
    %3265 = vmatmul.mubr.bf16.gmra.mrb[0].mxu0 %v2832
    %v3266 = vpop.f32.mrb[0].mxu0
    %v3267 = vadd.f32 %v2905, %v3266
    %v3268 = vpop.f32.mrb[0].mxu0
    %v3269 = vadd.f32 %v2909, %v3268
    %v3270 = vpop.f32.mrb[0].mxu0
    %v3271 = vpop.f32.mrb[0].mxu0
    %3272 = vdwg.mxu0
    %3273 = vmatprep.subr.bf16.mxu0 %v3137
    %3274 = vmatpush1.bf16.msra.mxu0 %v3136
    %3275 = vmatprep.subr.bf16.mxu0 %v3139
    %3276 = vmatpush1.bf16.msra.mxu0 %v3138
    %3277 = vmatprep.subr.bf16.mxu0 %v3141
    %3278 = vmatpush1.bf16.msra.mxu0 %v3140
    %3279 = vmatprep.subr.bf16.mxu0 %v3143
    %3280 = vmatpush1.bf16.msra.mxu0 %v3142
    %3281 = vmatprep.subr.bf16.mxu0 %v3145
    %3282 = vmatpush1.bf16.msra.mxu0 %v3144
    %3283 = vmatprep.subr.bf16.mxu0 %v3147
    %3284 = vmatpush1.bf16.msra.mxu0 %v3146
    %3285 = vmatprep.subr.bf16.mxu0 %v3149
    %3286 = vmatpush1.bf16.msra.mxu0 %v3148
    %3287 = vmatprep.subr.bf16.mxu0 %v3151
    %3288 = vmatpush1.bf16.msra.mxu0 %v3150
    %3289 = vmatprep.subr.bf16.mxu0 %v3153
    %3290 = vmatpush1.bf16.msra.mxu0 %v3152
    %3291 = vmatprep.subr.bf16.mxu0 %v3155
    %3292 = vmatpush1.bf16.msra.mxu0 %v3154
    %3293 = vmatprep.subr.bf16.mxu0 %v3157
    %3294 = vmatpush1.bf16.msra.mxu0 %v3156
    %3295 = vmatprep.subr.bf16.mxu0 %v3159
    %3296 = vmatpush1.bf16.msra.mxu0 %v3158
    %3297 = vmatprep.subr.bf16.mxu0 %v3161
    %3298 = vmatpush1.bf16.msra.mxu0 %v3160
    %3299 = vmatprep.subr.bf16.mxu0 %v3163
    %3300 = vmatpush1.bf16.msra.mxu0 %v3162
    %3301 = vmatprep.subr.bf16.mxu0 %v3165
    %3302 = vmatpush1.bf16.msra.mxu0 %v3164
    %3303 = vmatprep.subr.bf16.mxu0 %v3167
    %3304 = vmatpush1.bf16.msra.mxu0 %v3166
    %3305 = vmatprep.mubr.bf16.mxu0 %v2835
    %3306 = vmatmul.mubr.bf16.gmra.mrb[0].mxu0 %v2834
    %v3307 = vpop.f32.mrb[0].mxu0
    %v3308 = vadd.f32 %v3267, %v3307
    %v3309 = vpop.f32.mrb[0].mxu0
    %v3310 = vadd.f32 %v3269, %v3309
    %v3311 = vpop.f32.mrb[0].mxu0
    %v3312 = vpop.f32.mrb[0].mxu0
    %3313 = vdwg.mxu0
    %v3314 = vmax.f32 %v3308, 0.0
    %v3315 = vmax.f32 %v3310, 0.0
    %v3316 = vpack.c.bf16 %v3314, %v3314
    %v3317 = vpack.c.bf16 %v3315, %v3315
    %v3318 = vld [vmem:[#allocation10] sm:$0xf]
    %v3319 = vld [vmem:[#allocation10 + $0x4] sm:$0xf]
    %v3320 = vld [vmem:[#allocation10 + $0x8] sm:$0xf]
    %v3321 = vld [vmem:[#allocation10 + $0xc] sm:$0xf]
    %v3322 = vld [vmem:[#allocation10 + $0x10] sm:$0xf]
    %v3323 = vld [vmem:[#allocation10 + $0x14] sm:$0xf]
    %v3324 = vld [vmem:[#allocation10 + $0x18] sm:$0xf]
    %v3325 = vld [vmem:[#allocation10 + $0x1c] sm:$0xf]
    %v3326 = vld [vmem:[#allocation10 + $0x20] sm:$0xf]
    %v3327 = vld [vmem:[#allocation10 + $0x24] sm:$0xf]
    %v3328 = vld [vmem:[#allocation10 + $0x28] sm:$0xf]
    %v3329 = vld [vmem:[#allocation10 + $0x2c] sm:$0xf]
    %v3330 = vld [vmem:[#allocation10 + $0x30] sm:$0xf]
    %v3331 = vld [vmem:[#allocation10 + $0x34] sm:$0xf]
    %v3332 = vld [vmem:[#allocation10 + $0x38] sm:$0xf]
    %v3333 = vld [vmem:[#allocation10 + $0x3c] sm:$0xf]
    %v3334 = vld [vmem:[#allocation10 + $0x40] sm:$0xf]
    %v3335 = vld [vmem:[#allocation10 + $0x44] sm:$0xf]
    %v3336 = vld [vmem:[#allocation10 + $0x48] sm:$0xf]
    %v3337 = vld [vmem:[#allocation10 + $0x4c] sm:$0xf]
    %v3338 = vld [vmem:[#allocation10 + $0x50] sm:$0xf]
    %v3339 = vld [vmem:[#allocation10 + $0x54] sm:$0xf]
    %v3340 = vld [vmem:[#allocation10 + $0x58] sm:$0xf]
    %v3341 = vld [vmem:[#allocation10 + $0x5c] sm:$0xf]
    %v3342 = vld [vmem:[#allocation10 + $0x60] sm:$0xf]
    %v3343 = vld [vmem:[#allocation10 + $0x64] sm:$0xf]
    %v3344 = vld [vmem:[#allocation10 + $0x68] sm:$0xf]
    %v3345 = vld [vmem:[#allocation10 + $0x6c] sm:$0xf]
    %v3346 = vld [vmem:[#allocation10 + $0x70] sm:$0xf]
    %v3347 = vld [vmem:[#allocation10 + $0x74] sm:$0xf]
    %v3348 = vld [vmem:[#allocation10 + $0x78] sm:$0xf]
    %v3349 = vld [vmem:[#allocation10 + $0x7c] sm:$0xf]
    %v3350 = vld [vmem:[#allocation12] sm:$0x1]
    %v3352 = vlaneseq
    %v3353 = vshrl.u32 %v3352, 7
    %v3354 = vsub.s32 0, %v3353
    %v3355 = vrot.slane %v3350, %v3354
    %v3389 = vunpack.c.l.b16 %v3318
    %v3390 = vunpack.c.l.b16 %v3319
    %v3391 = vunpack.c.l.b16 %v3320
    %v3392 = vunpack.c.l.b16 %v3321
    %v3393 = vunpack.c.l.b16 %v3322
    %v3394 = vunpack.c.l.b16 %v3323
    %v3395 = vunpack.c.l.b16 %v3324
    %v3396 = vunpack.c.l.b16 %v3325
    %v3397 = vunpack.c.l.b16 %v3326
    %v3398 = vunpack.c.l.b16 %v3327
    %v3399 = vunpack.c.l.b16 %v3328
    %v3400 = vunpack.c.l.b16 %v3329
    %v3401 = vunpack.c.l.b16 %v3330
    %v3402 = vunpack.c.l.b16 %v3331
    %v3403 = vunpack.c.l.b16 %v3332
    %v3404 = vunpack.c.l.b16 %v3333
    %v3405 = vunpack.c.l.b16 %v3334
    %v3406 = vunpack.c.l.b16 %v3335
    %v3407 = vunpack.c.l.b16 %v3336
    %v3408 = vunpack.c.l.b16 %v3337
    %v3409 = vunpack.c.l.b16 %v3338
    %v3410 = vunpack.c.l.b16 %v3339
    %v3411 = vunpack.c.l.b16 %v3340
    %v3412 = vunpack.c.l.b16 %v3341
    %v3413 = vunpack.c.l.b16 %v3342
    %v3414 = vunpack.c.l.b16 %v3343
    %v3415 = vunpack.c.l.b16 %v3344
    %v3416 = vunpack.c.l.b16 %v3345
    %v3417 = vunpack.c.l.b16 %v3346
    %v3418 = vunpack.c.l.b16 %v3347
    %v3419 = vunpack.c.l.b16 %v3348
    %v3420 = vunpack.c.l.b16 %v3349
    %v3421 = vpack.c.b16 %v3390, %v3389
    %v3422 = vpack.c.b16 %v3392, %v3391
    %v3423 = vpack.c.b16 %v3394, %v3393
    %v3424 = vpack.c.b16 %v3396, %v3395
    %v3425 = vpack.c.b16 %v3398, %v3397
    %v3426 = vpack.c.b16 %v3400, %v3399
    %v3427 = vpack.c.b16 %v3402, %v3401
    %v3428 = vpack.c.b16 %v3404, %v3403
    %v3429 = vpack.c.b16 %v3406, %v3405
    %v3430 = vpack.c.b16 %v3408, %v3407
    %v3431 = vpack.c.b16 %v3410, %v3409
    %v3432 = vpack.c.b16 %v3412, %v3411
    %v3433 = vpack.c.b16 %v3414, %v3413
    %v3434 = vpack.c.b16 %v3416, %v3415
    %v3435 = vpack.c.b16 %v3418, %v3417
    %v3436 = vpack.c.b16 %v3420, %v3419
    %3453 = vmatprep.subr.bf16.mxu0 0
    %3454 = vmatpush1.bf16.msra.mxu0 %v3421
    %3455 = vmatprep.subr.bf16.mxu0 0
    %3456 = vmatpush1.bf16.msra.mxu0 %v3422
    %3457 = vmatprep.subr.bf16.mxu0 0
    %3458 = vmatpush1.bf16.msra.mxu0 %v3423
    %3459 = vmatprep.subr.bf16.mxu0 0
    %3460 = vmatpush1.bf16.msra.mxu0 %v3424
    %3461 = vmatprep.subr.bf16.mxu0 0
    %3462 = vmatpush1.bf16.msra.mxu0 %v3425
    %3463 = vmatprep.subr.bf16.mxu0 0
    %3464 = vmatpush1.bf16.msra.mxu0 %v3426
    %3465 = vmatprep.subr.bf16.mxu0 0
    %3466 = vmatpush1.bf16.msra.mxu0 %v3427
    %3467 = vmatprep.subr.bf16.mxu0 0
    %3468 = vmatpush1.bf16.msra.mxu0 %v3428
    %3469 = vmatprep.subr.bf16.mxu0 0
    %3470 = vmatpush1.bf16.msra.mxu0 %v3429
    %3471 = vmatprep.subr.bf16.mxu0 0
    %3472 = vmatpush1.bf16.msra.mxu0 %v3430
    %3473 = vmatprep.subr.bf16.mxu0 0
    %3474 = vmatpush1.bf16.msra.mxu0 %v3431
    %3475 = vmatprep.subr.bf16.mxu0 0
    %3476 = vmatpush1.bf16.msra.mxu0 %v3432
    %3477 = vmatprep.subr.bf16.mxu0 0
    %3478 = vmatpush1.bf16.msra.mxu0 %v3433
    %3479 = vmatprep.subr.bf16.mxu0 0
    %3480 = vmatpush1.bf16.msra.mxu0 %v3434
    %3481 = vmatprep.subr.bf16.mxu0 0
    %3482 = vmatpush1.bf16.msra.mxu0 %v3435
    %3483 = vmatprep.subr.bf16.mxu0 0
    %3484 = vmatpush1.bf16.msra.mxu0 %v3436
    %3485 = vmatprep.mubr.bf16.mxu0 %v3317
    %3486 = vmatmul.mubr.bf16.gmra.mrb[0].mxu0 %v3316
    %v3487 = vpop.f32.mrb[0].mxu0
    %v3488 = vadd.f32 %v3355, %v3487
    %v3489 = vpop.f32.mrb[0].mxu0
    %v3490 = vpop.f32.mrb[0].mxu0
    %v3491 = vpop.f32.mrb[0].mxu0
    %3492 = vdwg.mxu0
    %v3493 = vmax.f32 %v3488, 0.0
    %v3494 = vpack.c.bf16 %v3493, %v3493
    %v3495 = vld [vmem:[#allocation13] sm:$0xf]
    %v3496 = vld [vmem:[#allocation13 + $0x4] sm:$0xf]
    %v3497 = vld [vmem:[#allocation13 + $0x8] sm:$0xf]
    %v3498 = vld [vmem:[#allocation13 + $0xc] sm:$0xf]
    %v3499 = vld [vmem:[#allocation13 + $0x10] sm:$0xf]
    %v3500 = vld [vmem:[#allocation13 + $0x14] sm:$0xf]
    %v3501 = vld [vmem:[#allocation13 + $0x18] sm:$0xf]
    %v3502 = vld [vmem:[#allocation13 + $0x1c] sm:$0xf]
    %v3503 = vld [vmem:[#allocation13 + $0x20] sm:$0xf]
    %v3504 = vld [vmem:[#allocation13 + $0x24] sm:$0xf]
    %v3505 = vld [vmem:[#allocation13 + $0x28] sm:$0xf]
    %v3506 = vld [vmem:[#allocation13 + $0x2c] sm:$0xf]
    %v3507 = vld [vmem:[#allocation13 + $0x30] sm:$0xf]
    %v3508 = vld [vmem:[#allocation13 + $0x34] sm:$0xf]
    %v3509 = vld [vmem:[#allocation13 + $0x38] sm:$0xf]
    %v3510 = vld [vmem:[#allocation13 + $0x3c] sm:$0xf]
    %v3511 = vld [vmem:[#allocation15] sm:$0x1]
    %v3513 = vlaneseq
    %v3514 = vshrl.u32 %v3513, 7
    %v3515 = vsub.s32 0, %v3514
    %v3516 = vrot.slane %v3511, %v3515
    %v3534 = vunpack.c.l.b16 %v3495
    %v3535 = vunpack.c.l.b16 %v3496
    %v3536 = vunpack.c.l.b16 %v3497
    %v3537 = vunpack.c.l.b16 %v3498
    %v3538 = vunpack.c.l.b16 %v3499
    %v3539 = vunpack.c.l.b16 %v3500
    %v3540 = vunpack.c.l.b16 %v3501
    %v3541 = vunpack.c.l.b16 %v3502
    %v3542 = vunpack.c.l.b16 %v3503
    %v3543 = vunpack.c.l.b16 %v3504
    %v3544 = vunpack.c.l.b16 %v3505
    %v3545 = vunpack.c.l.b16 %v3506
    %v3546 = vunpack.c.l.b16 %v3507
    %v3547 = vunpack.c.l.b16 %v3508
    %v3548 = vunpack.c.l.b16 %v3509
    %v3549 = vunpack.c.l.b16 %v3510
    %v3550 = vpack.c.b16 %v3535, %v3534
    %v3551 = vpack.c.b16 %v3537, %v3536
    %v3552 = vpack.c.b16 %v3539, %v3538
    %v3553 = vpack.c.b16 %v3541, %v3540
    %v3554 = vpack.c.b16 %v3543, %v3542
    %v3555 = vpack.c.b16 %v3545, %v3544
    %v3556 = vpack.c.b16 %v3547, %v3546
    %v3557 = vpack.c.b16 %v3549, %v3548
    %3566 = vmatprep.subr.bf16.mxu0 0
    %3567 = vmatpush1.bf16.msra.mxu0 %v3550
    %3568 = vmatprep.subr.bf16.mxu0 0
    %3569 = vmatpush1.bf16.msra.mxu0 %v3551
    %3570 = vmatprep.subr.bf16.mxu0 0
    %3571 = vmatpush1.bf16.msra.mxu0 %v3552
    %3572 = vmatprep.subr.bf16.mxu0 0
    %3573 = vmatpush1.bf16.msra.mxu0 %v3553
    %3574 = vmatprep.subr.bf16.mxu0 0
    %3575 = vmatpush1.bf16.msra.mxu0 %v3554
    %3576 = vmatprep.subr.bf16.mxu0 0
    %3577 = vmatpush1.bf16.msra.mxu0 %v3555
    %3578 = vmatprep.subr.bf16.mxu0 0
    %3579 = vmatpush1.bf16.msra.mxu0 %v3556
    %3580 = vmatprep.subr.bf16.mxu0 0
    %3581 = vmatpush1.bf16.msra.mxu0 %v3557
    %3582 = vmatprep.subr.bf16.mxu0 0
    %3583 = vmatpush1.bf16.msra.mxu0 0
    %3584 = vmatprep.subr.bf16.mxu0 0
    %3585 = vmatpush1.bf16.msra.mxu0 0
    %3586 = vmatprep.subr.bf16.mxu0 0
    %3587 = vmatpush1.bf16.msra.mxu0 0
    %3588 = vmatprep.subr.bf16.mxu0 0
    %3589 = vmatpush1.bf16.msra.mxu0 0
    %3590 = vmatprep.subr.bf16.mxu0 0
    %3591 = vmatpush1.bf16.msra.mxu0 0
    %3592 = vmatprep.subr.bf16.mxu0 0
    %3593 = vmatpush1.bf16.msra.mxu0 0
    %3594 = vmatprep.subr.bf16.mxu0 0
    %3595 = vmatpush1.bf16.msra.mxu0 0
    %3596 = vmatprep.subr.bf16.mxu0 0
    %3597 = vmatpush1.bf16.msra.mxu0 0
    %3598 = vmatprep.mubr.bf16.mxu0 0
    %3599 = vmatmul.mubr.bf16.gmra.mrb[0].mxu0 %v3494
    %v3600 = vpop.f32.mrb[0].mxu0
    %v3601 = vadd.f32 %v3516, %v3600
    %v3602 = vpop.f32.mrb[0].mxu0
    %v3603 = vpop.f32.mrb[0].mxu0
    %v3604 = vpop.f32.mrb[0].mxu0
    %3605 = vdwg.mxu0
    %v3606 = vpack.c.bf16 %v3601, %v3601
    %3607 = vst [vmem:[%s9] sm:$0xf] %v3606
    // Predicated region
    $region74: #{simple_classifier.1} parent=1 // pred_check
      _
    $region75: #{simple_classifier.1} parent=1 // pred_check_branch
      %3609 = sbr.rel (0) target = $region77
    $region76: #{simple_classifier.1} parent=1 // pred_region
      _
    $region77: #{simple_classifier.1} parent=1 // pred_fallthru
      _
    // Predicated region
    $region78: #{simple_classifier.1} parent=1 // pred_check
      _
    $region79: #{simple_classifier.1} parent=1 // pred_check_branch
      %3611 = sbr.rel (0) target = $region81
    $region80: #{simple_classifier.1} parent=1 // pred_region
      _
    $region81: #{simple_classifier.1} parent=1 // pred_fallthru
      _
    %3612 = vsyncpa [#allocation3], 1
    %3613 = vsyncpa [#allocation5], 1
    %3614 = vsyncpa [#allocation8], 1
    %3615 = vsyncpa [#allocation11], 1
    %3616 = vsyncpa [#allocation14], 1

</llo_original>
